<compile_context>
chip_gen: v6e
topology: v6e:2x2x1
jax: 0.10.0
libtpu: 0.0.40
codegen_flags: <defaults>
</compile_context>

<pallas_src>
import math

import numpy as np

import jax
import jax.numpy as jnp
from jax.experimental import pallas as pl
from jax.experimental.pallas import tpu as pltpu

LEAKY_SLOPE = 0.01  # nn.LeakyReLU() default negative_slope


# ----------------------------------------------------------------------------
# Helpers
# ----------------------------------------------------------------------------
def _ru(x, m):
    return ((x + m - 1) // m) * m


def _tpu_vmem_config():
    """Generation-aware VMEM budgets (128 MiB on v5e/v6e, 64 MiB on v7x)."""
    try:
        info = pltpu.get_tpu_info()
        phys = int(getattr(info, "vmem_capacity_bytes", 64 * 1024 * 1024))
    except Exception:
        phys = 64 * 1024 * 1024
    limit = (phys * 3) // 4          # 96 MiB on 128-MiB chips, 48 MiB on v7x
    return {
        "vmem_limit": limit,
        "tile_budget": limit // 2,
        "tm_max": 2048 if phys >= 96 * 1024 * 1024 else 1024,
    }


def _pick_row_tiles(n, ho, wo, cp, coutp, tile_budget, tm_max):
    """Number of output-row tiles per image (power of two dividing Ho).

    Working set honestly counts double-buffering of every operand (input block,
    resident weight+bias, output block)."""
    def tile_bytes(t):
        tho = ho // t
        x_blk = (tho + 1) * 2 * (wo + 1) * 2 * cp * 2       # bf16 input window
        o_blk = tho * wo * coutp * 2                        # bf16 output block
        w_blk = 9 * cp * coutp * 2 + coutp * 4              # bf16 weight + f32 bias
        return 2 * (x_blk + o_blk + w_blk)

    t = 1
    while ho // t > 1 and (((ho // t) * wo > tm_max) or (tile_bytes(t) > tile_budget)):
        t *= 2
    # v7x megacore: make sure the grid has >= 2 steps when there is real work.
    if n * t == 1 and ho * wo >= 512 and ho // t >= 2:
        t *= 2
    return t


def _head_prep(x_nhwc, cp, tho, t_tiles):
    """Zero-pad + FREE reshape to phase layout + overlapping row-window stack.

    Returns (N, T, tho+1, 2, Wo+1, 2*cp) bf16; element (n,t,i,ph,b,lane) is
    x_pad[n, 2*(t*tho+i)+ph, 2*b + lane//cp, lane%cp]."""
    n, h, w, c = x_nhwc.shape
    ho, wo = h // 2, w // 2
    a, b = ho + 1, wo + 1
    xp = jnp.pad(x_nhwc.astype(jnp.bfloat16),
                 ((0, 0), (1, 1), (1, 1), (0, cp - c)))
    xp5 = xp.reshape(n, a, 2, b, 2 * cp)                    # free (row-major) reshape
    if t_tiles == 1:
        return xp5[:, None]
    tho_all = [xp5[:, t * tho: t * tho + tho + 1] for t in range(t_tiles)]
    return jnp.stack(tho_all, axis=1)


# ----------------------------------------------------------------------------
# Pallas kernels
# ----------------------------------------------------------------------------
def _make_head_kernel(tho, wo, cp):
    """One (image, row-band) tile of a stride-2 3x3 conv + LeakyReLU.

    9 accumulating MXU matmuls with K = Cin; each tap is a contiguous static
    slice of the phase-layout VMEM block (no strided loads, no im2col array)."""
    tm = tho * wo

    def kernel(x_ref, w_ref, b_ref, o_ref):
        acc = jnp.zeros((tm, o_ref.shape[-1]), jnp.float32)
        for kh in range(3):
            for kw in range(3):
                dh, ph = kh // 2, kh % 2
                dw, pc = kw // 2, kw % 2
                lhs = x_ref[0, 0, dh:dh + tho, ph, dw:dw + wo,
                            pc * cp:(pc + 1) * cp]          # (tho, wo, cp) bf16
                acc = acc + jnp.dot(lhs.reshape(tm, cp), w_ref[kh * 3 + kw],
                                    preferred_element_type=jnp.float32)
        y = acc + b_ref[...]
        o_ref[0, 0] = jnp.where(y > 0, y, LEAKY_SLOPE * y).astype(o_ref.dtype)

    return kernel


def _make_tail_kernel(n_convs):
    """Fused small-spatial tail: n_convs stride-2 convs (+LeakyReLU) + EqualLinear.

    Tap gathering uses precomputed 0/1 selection matrices (S_k @ h), so the whole
    kernel is plain 2-D matmuls; all tail weights are VMEM-resident."""
    def kernel(*refs):
        h_ref = refs[0]
        conv_refs = refs[1:1 + 3 * n_convs]
        wl_ref, bl_ref, o_ref = refs[1 + 3 * n_convs:]
        h = h_ref[0]                                        # (m_in_p, cp) bf16
        for j in range(n_convs):
            s_ref, w_ref, b_ref = conv_refs[3 * j:3 * (j + 1)]
            mo = s_ref.shape[1]
            acc = jnp.zeros((mo, w_ref.shape[2]), jnp.float32)
            for k in range(9):
                g = jnp.dot(s_ref[k], h, preferred_element_type=jnp.float32)
                acc = acc + jnp.dot(g.astype(jnp.bfloat16), w_ref[k],
                                    preferred_element_type=jnp.float32)
            y = acc + b_ref[...]
            h = jnp.where(y > 0, y, LEAKY_SLOPE * y).astype(jnp.bfloat16)
        out = jnp.dot(h, wl_ref[...], preferred_element_type=jnp.float32) + bl_ref[...]
        o_ref[0] = out

    return kernel


# ----------------------------------------------------------------------------
# Wrappers
# ----------------------------------------------------------------------------
def head_conv(x_nhwc, layer, cfg):
    """Stride-2 3x3 conv + LeakyReLU for large-spatial layers (input spatial >= 16)."""
    n, h, w, _ = x_nhwc.shape
    ho, wo = h // 2, w // 2
    bdim = wo + 1
    cp, coutp = layer["cinp"], layer["coutp"]

    t_tiles = _pick_row_tiles(n, ho, wo, cp, coutp, cfg["tile_budget"], cfg["tm_max"])
    tho = ho // t_tiles
    tm = tho * wo

    xw = _head_prep(x_nhwc, cp, tho, t_tiles)

    out = pl.pallas_call(
        _make_head_kernel(tho, wo, cp),
        out_shape=jax.ShapeDtypeStruct((n, t_tiles, tm, coutp), jnp.bfloat16),
        grid_spec=pltpu.PrefetchScalarGridSpec(
            num_scalar_prefetch=0,
            grid=(n, t_tiles),
            in_specs=[
                pl.BlockSpec((1, 1, tho + 1, 2, bdim, 2 * cp),
                             lambda i, t: (i, t, 0, 0, 0, 0)),
                pl.BlockSpec((9, cp, coutp), lambda i, t: (0, 0, 0)),   # resident
                pl.BlockSpec((1, coutp), lambda i, t: (0, 0)),          # resident
            ],
            out_specs=pl.BlockSpec((1, 1, tm, coutp), lambda i, t: (i, t, 0, 0)),
        ),
        compiler_params=pltpu.CompilerParams(
            dimension_semantics=("parallel", "parallel"),
            vmem_limit_bytes=cfg["vmem_limit"],
        ),
    )(xw, layer["w"], layer["b"])

    # (N, T, tho*Wo, Coutp) -> (N, Ho, Wo, Coutp): free row-major reshape.
    return out.reshape(n, ho, wo, coutp)


def _const_map(nd):
    return lambda i: (0,) * nd


def tail_forward(prepared, h0, n, cfg):
    """Fused: remaining small convs (+LeakyReLU) + view(-1, out_c) + EqualLinear."""
    tail = prepared["tail"]
    lin = prepared["linear"]
    cp0 = tail[0]["cinp"]
    m0p = tail[0]["S"].shape[2]
    outp = lin["w"].shape[1]
    m_last_p = tail[-1]["S"].shape[1]

    if h0.shape[-1] < cp0:
        h0 = jnp.pad(h0, ((0, 0), (0, 0), (0, cp0 - h0.shape[-1])))
    if h0.shape[1] < m0p:
        h0 = jnp.pad(h0, ((0, 0), (0, m0p - h0.shape[1]), (0, 0)))
    h0 = h0.astype(jnp.bfloat16)

    args = [h0]
    in_specs = [pl.BlockSpec((1, m0p, cp0), lambda i: (i, 0, 0))]
    for e in tail:
        for arr in (e["S"], e["w"], e["b"]):
            args.append(arr)
            in_specs.append(pl.BlockSpec(arr.shape, _const_map(arr.ndim)))
    for arr in (lin["w"], lin["b"]):
        args.append(arr)
        in_specs.append(pl.BlockSpec(arr.shape, _const_map(arr.ndim)))

    out = pl.pallas_call(
        _make_tail_kernel(len(tail)),
        out_shape=jax.ShapeDtypeStruct((n, m_last_p, outp), jnp.float32),
        grid_spec=pltpu.PrefetchScalarGridSpec(
            num_scalar_prefetch=0,
            grid=(n,),
            in_specs=in_specs,
            out_specs=pl.BlockSpec((1, m_last_p, outp), lambda i: (i, 0, 0)),
        ),
        compiler_params=pltpu.CompilerParams(
            dimension_semantics=("parallel",),
            vmem_limit_bytes=cfg["vmem_limit"],
        ),
    )(*args)

    return out[:, 0, :lin["out_dim"]]


# ----------------------------------------------------------------------------
# Parameters
# ----------------------------------------------------------------------------
def init_gradual_style_block_params(key, in_c, out_c, spatial):
    """Deterministic synthetic raw parameters (shapes match the PyTorch module)."""
    num_pools = int(math.log2(spatial))
    params = {"convs": [], "linear": {}}
    cin = in_c
    for _ in range(num_pools):
        key, kw_, kb_ = jax.random.split(key, 3)
        # stored as (9, Cin, Cout) == taps (kh*3+kw) x Cin x Cout
        w = jax.random.normal(kw_, (9, cin, out_c), jnp.float32) * 0.05
        b = jax.random.normal(kb_, (out_c,), jnp.float32) * 0.01
        params["convs"].append((w, b))
        cin = out_c
    key, kl = jax.random.split(key)
    lr_mul = 1.0
    # EqualLinear init: weight = randn(out, in) / lr_mul ; bias = zeros
    params["linear"]["weight"] = (
        jax.random.normal(kl, (out_c, out_c), jnp.float32) / lr_mul)
    params["linear"]["bias"] = jnp.zeros((out_c,), jnp.float32)
    params["linear"]["lr_mul"] = lr_mul
    return params


def _tap_select_matrices(s):
    """Per-image 0/1 selection matrices for a stride-2 pad-1 3x3 conv at spatial s.

    S[k] has shape (ceil(ho*wo,8), ceil(s*s,8)); rows/cols beyond the real sizes
    are zero, and out-of-bounds (padding) taps simply select nothing."""
    ho = s // 2
    m_in_p = _ru(s * s, 8)
    m_out_p = _ru(ho * ho, 8)
    sel = np.zeros((9, m_out_p, m_in_p), np.float32)
    for r in range(ho):
        for c in range(ho):
            row = r * ho + c
            for kh in range(3):
                for kw in range(3):
                    ii, jj = 2 * r + kh - 1, 2 * c + kw - 1
                    if 0 <= ii < s and 0 <= jj < s:
                        sel[kh * 3 + kw, row, ii * s + jj] = 1.0
    return sel


def prepare_params(raw, spatial):
    """One-time prep: lane-pad weights, split head/tail layers, build selection
    matrices for the fused tail, scale EqualLinear, cast bf16."""
    prepared = {"head": [], "tail": [], "linear": {}}
    s = spatial
    for (w, b) in raw["convs"]:
        _, cin, cout = w.shape
        cinp, coutp = _ru(cin, 128), _ru(cout, 128)
        entry = {
            "w": jnp.pad(w, ((0, 0), (0, cinp - cin), (0, coutp - cout))
                         ).astype(jnp.bfloat16),                 # (9, Cinp, Coutp)
            "b": jnp.pad(b, (0, coutp - cout)).reshape(1, coutp).astype(jnp.float32),
            "cin": cin, "cout": cout, "cinp": cinp, "coutp": coutp, "s_in": s,
        }
        if s >= 16:
            prepared["head"].append(entry)
        else:
            entry["S"] = jnp.asarray(_tap_select_matrices(s), jnp.bfloat16)
            prepared["tail"].append(entry)
        s //= 2

    lin = raw["linear"]
    out_dim, in_dim = lin["weight"].shape
    lr_mul = lin["lr_mul"]
    scale = (1.0 / math.sqrt(in_dim)) * lr_mul
    w_eff = (lin["weight"] * scale).T                              # (in_dim, out_dim)
    b_eff = lin["bias"] * lr_mul
    inp, outp = _ru(in_dim, 128), _ru(out_dim, 128)
    prepared["linear"] = {
        "w": jnp.pad(w_eff, ((0, inp - in_dim), (0, outp - out_dim))
                     ).astype(jnp.bfloat16),
        "b": jnp.pad(b_eff, (0, outp - out_dim)).reshape(1, outp).astype(jnp.float32),
        "in_dim": in_dim, "out_dim": out_dim,
    }
    return prepared


# ----------------------------------------------------------------------------
# Forward
# ----------------------------------------------------------------------------
def gradual_style_block_forward(prepared, x_nchw):
    """Forward pass. Input is NCHW (PyTorch convention); returns (N, out_c) f32."""
    cfg = _tpu_vmem_config()
    x = jnp.transpose(x_nchw, (0, 2, 3, 1))                        # NCHW -> NHWC
    for layer in prepared["head"]:
        x = head_conv(x, layer, cfg)
    n = x.shape[0]
    h0 = x.reshape(n, x.shape[1] * x.shape[2], x.shape[3])         # per-image rows
    return tail_forward(prepared, h0, n, cfg)


# ----------------------------------------------------------------------------
# Reference (pure JAX, same bf16-operand / f32-accumulate numerics)
# ----------------------------------------------------------------------------
def _reference_forward(raw, x_nchw, out_c):
    x = jnp.transpose(x_nchw, (0, 2, 3, 1)).astype(jnp.bfloat16)
    for (w_taps, b) in raw["convs"]:
        cin, cout = w_taps.shape[1], w_taps.shape[2]
        w_hwio = w_taps.reshape(3, 3, cin, cout).astype(jnp.bfloat16)
        y = jax.lax.conv_general_dilated(
            x, w_hwio, window_strides=(2, 2), padding=((1, 1), (1, 1)),
            dimension_numbers=("NHWC", "HWIO", "NHWC"),
            preferred_element_type=jnp.float32)
        y = y + b
        x = jnp.where(y > 0, y, LEAKY_SLOPE * y).astype(jnp.bfloat16)
    x = x.reshape(-1, out_c)
    lin = raw["linear"]
    scale = (1.0 / math.sqrt(lin["weight"].shape[1])) * lin["lr_mul"]
    w_eff = ((lin["weight"] * scale).T).astype(jnp.bfloat16)
    return (jnp.dot(x, w_eff, preferred_element_type=jnp.float32)
            + lin["bias"] * lin["lr_mul"])


if __name__ == "__main__":
    in_c, out_c, spatial, batch = 4, 32, 16, 2
    key = jax.random.PRNGKey(0)
    kparams, kx = jax.random.split(key)

    raw_params = init_gradual_style_block_params(kparams, in_c, out_c, spatial)
    prepared = prepare_params(raw_params, spatial)
    x = jax.random.normal(kx, (batch, in_c, spatial, spatial), jnp.float32)

    out = gradual_style_block_forward(prepared, x)
    out = jax.block_until_ready(out)

    ref = _reference_forward(raw_params, x, out_c)
    assert out.shape == (batch, out_c), out.shape
    max_err = float(jnp.max(jnp.abs(out - ref)))
    assert jnp.allclose(out, ref, atol=2e-2, rtol=2e-2), max_err

    print("KERNEL_OK")
</pallas_src>

<mosaic_0001>
module attributes {stable_mosaic.version = 11 : i64} {
  func.func @kernel(%arg0: i32, %arg1: i32, %arg2: memref<1x1x9x2x9x256xbf16, #tpu.memory_space<vmem>>, %arg3: memref<9x128x128xbf16, #tpu.memory_space<vmem>>, %arg4: memref<1x128xf32, #tpu.memory_space<vmem>>, %arg5: memref<1x1x64x128xbf16, #tpu.memory_space<vmem>>) attributes {dimension_semantics = [#tpu.dimension_semantics<parallel>, #tpu.dimension_semantics<parallel>], iteration_bounds = array<i64: 2, 1>, scalar_prefetch = 0 : i64, scratch_operands = 0 : i64, tpu.core_type = #tpu.core_type<tc>, window_params = [{transform_indices = @transform_0, window_bounds = array<i64: 1, 1, 9, 2, 9, 256>}, {pipeline_mode = #tpu.pipeline_mode<synchronous>, transform_indices = @transform_1, window_bounds = array<i64: 9, 128, 128>}, {pipeline_mode = #tpu.pipeline_mode<synchronous>, transform_indices = @transform_2, window_bounds = array<i64: 1, 128>}, {transform_indices = @transform_3, window_bounds = array<i64: 1, 1, 64, 128>}]} {
    %cst = arith.constant 0.000000e+00 : f32
    %0 = vector.broadcast %cst : f32 to vector<64x128xf32>
    %c0 = arith.constant 0 : index
    %c0_0 = arith.constant 0 : index
    %c0_1 = arith.constant 0 : index
    %c0_2 = arith.constant 0 : index
    %c0_3 = arith.constant 0 : index
    %c0_4 = arith.constant 0 : index
    %1 = vector.load %arg2[%c0, %c0_0, %c0_1, %c0_2, %c0_3, %c0_4] : memref<1x1x9x2x9x256xbf16, #tpu.memory_space<vmem>>, vector<1x1x8x1x8x128xbf16>
    %2 = vector.shape_cast %1 : vector<1x1x8x1x8x128xbf16> to vector<8x8x128xbf16>
    %3 = vector.shape_cast %2 : vector<8x8x128xbf16> to vector<64x128xbf16>
    %c0_5 = arith.constant 0 : index
    %c0_6 = arith.constant 0 : index
    %c0_7 = arith.constant 0 : index
    %4 = vector.load %arg3[%c0_5, %c0_6, %c0_7] : memref<9x128x128xbf16, #tpu.memory_space<vmem>>, vector<1x128x128xbf16>
    %5 = vector.shape_cast %4 : vector<1x128x128xbf16> to vector<128x128xbf16>
    %cst_8 = arith.constant dense<0.000000e+00> : vector<64x128xf32>
    %6 = tpu.matmul %3, %5, %cst_8 {dimension_numbers = #tpu.dot_dimension_numbers<[1], [0], [0], [1], [0, 0, 1, 1], [], []>} : vector<64x128xbf16>, vector<128x128xbf16>, vector<64x128xf32> -> vector<64x128xf32>
    %7 = arith.addf %0, %6 : vector<64x128xf32>
    %c0_9 = arith.constant 0 : index
    %c0_10 = arith.constant 0 : index
    %c0_11 = arith.constant 0 : index
    %c0_12 = arith.constant 0 : index
    %c0_13 = arith.constant 0 : index
    %c128 = arith.constant 128 : index
    %8 = vector.load %arg2[%c0_9, %c0_10, %c0_11, %c0_12, %c0_13, %c128] : memref<1x1x9x2x9x256xbf16, #tpu.memory_space<vmem>>, vector<1x1x8x1x8x128xbf16>
    %9 = vector.shape_cast %8 : vector<1x1x8x1x8x128xbf16> to vector<8x8x128xbf16>
    %10 = vector.shape_cast %9 : vector<8x8x128xbf16> to vector<64x128xbf16>
    %c1 = arith.constant 1 : index
    %c0_14 = arith.constant 0 : index
    %c0_15 = arith.constant 0 : index
    %11 = vector.load %arg3[%c1, %c0_14, %c0_15] : memref<9x128x128xbf16, #tpu.memory_space<vmem>>, vector<1x128x128xbf16>
    %12 = vector.shape_cast %11 : vector<1x128x128xbf16> to vector<128x128xbf16>
    %cst_16 = arith.constant dense<0.000000e+00> : vector<64x128xf32>
    %13 = tpu.matmul %10, %12, %cst_16 {dimension_numbers = #tpu.dot_dimension_numbers<[1], [0], [0], [1], [0, 0, 1, 1], [], []>} : vector<64x128xbf16>, vector<128x128xbf16>, vector<64x128xf32> -> vector<64x128xf32>
    %14 = arith.addf %7, %13 : vector<64x128xf32>
    %c0_17 = arith.constant 0 : index
    %c0_18 = arith.constant 0 : index
    %c0_19 = arith.constant 0 : index
    %c0_20 = arith.constant 0 : index
    %c1_21 = arith.constant 1 : index
    %c0_22 = arith.constant 0 : index
    %15 = vector.load %arg2[%c0_17, %c0_18, %c0_19, %c0_20, %c1_21, %c0_22] : memref<1x1x9x2x9x256xbf16, #tpu.memory_space<vmem>>, vector<1x1x8x1x8x128xbf16>
    %16 = vector.shape_cast %15 : vector<1x1x8x1x8x128xbf16> to vector<8x8x128xbf16>
    %17 = vector.shape_cast %16 : vector<8x8x128xbf16> to vector<64x128xbf16>
    %c2 = arith.constant 2 : index
    %c0_23 = arith.constant 0 : index
    %c0_24 = arith.constant 0 : index
    %18 = vector.load %arg3[%c2, %c0_23, %c0_24] : memref<9x128x128xbf16, #tpu.memory_space<vmem>>, vector<1x128x128xbf16>
    %19 = vector.shape_cast %18 : vector<1x128x128xbf16> to vector<128x128xbf16>
    %cst_25 = arith.constant dense<0.000000e+00> : vector<64x128xf32>
    %20 = tpu.matmul %17, %19, %cst_25 {dimension_numbers = #tpu.dot_dimension_numbers<[1], [0], [0], [1], [0, 0, 1, 1], [], []>} : vector<64x128xbf16>, vector<128x128xbf16>, vector<64x128xf32> -> vector<64x128xf32>
    %21 = arith.addf %14, %20 : vector<64x128xf32>
    %c0_26 = arith.constant 0 : index
    %c0_27 = arith.constant 0 : index
    %c0_28 = arith.constant 0 : index
    %c1_29 = arith.constant 1 : index
    %c0_30 = arith.constant 0 : index
    %c0_31 = arith.constant 0 : index
    %22 = vector.load %arg2[%c0_26, %c0_27, %c0_28, %c1_29, %c0_30, %c0_31] : memref<1x1x9x2x9x256xbf16, #tpu.memory_space<vmem>>, vector<1x1x8x1x8x128xbf16>
    %23 = vector.shape_cast %22 : vector<1x1x8x1x8x128xbf16> to vector<8x8x128xbf16>
    %24 = vector.shape_cast %23 : vector<8x8x128xbf16> to vector<64x128xbf16>
    %c3 = arith.constant 3 : index
    %c0_32 = arith.constant 0 : index
    %c0_33 = arith.constant 0 : index
    %25 = vector.load %arg3[%c3, %c0_32, %c0_33] : memref<9x128x128xbf16, #tpu.memory_space<vmem>>, vector<1x128x128xbf16>
    %26 = vector.shape_cast %25 : vector<1x128x128xbf16> to vector<128x128xbf16>
    %cst_34 = arith.constant dense<0.000000e+00> : vector<64x128xf32>
    %27 = tpu.matmul %24, %26, %cst_34 {dimension_numbers = #tpu.dot_dimension_numbers<[1], [0], [0], [1], [0, 0, 1, 1], [], []>} : vector<64x128xbf16>, vector<128x128xbf16>, vector<64x128xf32> -> vector<64x128xf32>
    %28 = arith.addf %21, %27 : vector<64x128xf32>
    %c0_35 = arith.constant 0 : index
    %c0_36 = arith.constant 0 : index
    %c0_37 = arith.constant 0 : index
    %c1_38 = arith.constant 1 : index
    %c0_39 = arith.constant 0 : index
    %c128_40 = arith.constant 128 : index
    %29 = vector.load %arg2[%c0_35, %c0_36, %c0_37, %c1_38, %c0_39, %c128_40] : memref<1x1x9x2x9x256xbf16, #tpu.memory_space<vmem>>, vector<1x1x8x1x8x128xbf16>
    %30 = vector.shape_cast %29 : vector<1x1x8x1x8x128xbf16> to vector<8x8x128xbf16>
    %31 = vector.shape_cast %30 : vector<8x8x128xbf16> to vector<64x128xbf16>
    %c4 = arith.constant 4 : index
    %c0_41 = arith.constant 0 : index
    %c0_42 = arith.constant 0 : index
    %32 = vector.load %arg3[%c4, %c0_41, %c0_42] : memref<9x128x128xbf16, #tpu.memory_space<vmem>>, vector<1x128x128xbf16>
    %33 = vector.shape_cast %32 : vector<1x128x128xbf16> to vector<128x128xbf16>
    %cst_43 = arith.constant dense<0.000000e+00> : vector<64x128xf32>
    %34 = tpu.matmul %31, %33, %cst_43 {dimension_numbers = #tpu.dot_dimension_numbers<[1], [0], [0], [1], [0, 0, 1, 1], [], []>} : vector<64x128xbf16>, vector<128x128xbf16>, vector<64x128xf32> -> vector<64x128xf32>
    %35 = arith.addf %28, %34 : vector<64x128xf32>
    %c0_44 = arith.constant 0 : index
    %c0_45 = arith.constant 0 : index
    %c0_46 = arith.constant 0 : index
    %c1_47 = arith.constant 1 : index
    %c1_48 = arith.constant 1 : index
    %c0_49 = arith.constant 0 : index
    %36 = vector.load %arg2[%c0_44, %c0_45, %c0_46, %c1_47, %c1_48, %c0_49] : memref<1x1x9x2x9x256xbf16, #tpu.memory_space<vmem>>, vector<1x1x8x1x8x128xbf16>
    %37 = vector.shape_cast %36 : vector<1x1x8x1x8x128xbf16> to vector<8x8x128xbf16>
    %38 = vector.shape_cast %37 : vector<8x8x128xbf16> to vector<64x128xbf16>
    %c5 = arith.constant 5 : index
    %c0_50 = arith.constant 0 : index
    %c0_51 = arith.constant 0 : index
    %39 = vector.load %arg3[%c5, %c0_50, %c0_51] : memref<9x128x128xbf16, #tpu.memory_space<vmem>>, vector<1x128x128xbf16>
    %40 = vector.shape_cast %39 : vector<1x128x128xbf16> to vector<128x128xbf16>
    %cst_52 = arith.constant dense<0.000000e+00> : vector<64x128xf32>
    %41 = tpu.matmul %38, %40, %cst_52 {dimension_numbers = #tpu.dot_dimension_numbers<[1], [0], [0], [1], [0, 0, 1, 1], [], []>} : vector<64x128xbf16>, vector<128x128xbf16>, vector<64x128xf32> -> vector<64x128xf32>
    %42 = arith.addf %35, %41 : vector<64x128xf32>
    %c0_53 = arith.constant 0 : index
    %c0_54 = arith.constant 0 : index
    %c1_55 = arith.constant 1 : index
    %c0_56 = arith.constant 0 : index
    %c0_57 = arith.constant 0 : index
    %c0_58 = arith.constant 0 : index
    %43 = vector.load %arg2[%c0_53, %c0_54, %c1_55, %c0_56, %c0_57, %c0_58] : memref<1x1x9x2x9x256xbf16, #tpu.memory_space<vmem>>, vector<1x1x8x1x8x128xbf16>
    %44 = vector.shape_cast %43 : vector<1x1x8x1x8x128xbf16> to vector<8x8x128xbf16>
    %45 = vector.shape_cast %44 : vector<8x8x128xbf16> to vector<64x128xbf16>
    %c6 = arith.constant 6 : index
    %c0_59 = arith.constant 0 : index
    %c0_60 = arith.constant 0 : index
    %46 = vector.load %arg3[%c6, %c0_59, %c0_60] : memref<9x128x128xbf16, #tpu.memory_space<vmem>>, vector<1x128x128xbf16>
    %47 = vector.shape_cast %46 : vector<1x128x128xbf16> to vector<128x128xbf16>
    %cst_61 = arith.constant dense<0.000000e+00> : vector<64x128xf32>
    %48 = tpu.matmul %45, %47, %cst_61 {dimension_numbers = #tpu.dot_dimension_numbers<[1], [0], [0], [1], [0, 0, 1, 1], [], []>} : vector<64x128xbf16>, vector<128x128xbf16>, vector<64x128xf32> -> vector<64x128xf32>
    %49 = arith.addf %42, %48 : vector<64x128xf32>
    %c0_62 = arith.constant 0 : index
    %c0_63 = arith.constant 0 : index
    %c1_64 = arith.constant 1 : index
    %c0_65 = arith.constant 0 : index
    %c0_66 = arith.constant 0 : index
    %c128_67 = arith.constant 128 : index
    %50 = vector.load %arg2[%c0_62, %c0_63, %c1_64, %c0_65, %c0_66, %c128_67] : memref<1x1x9x2x9x256xbf16, #tpu.memory_space<vmem>>, vector<1x1x8x1x8x128xbf16>
    %51 = vector.shape_cast %50 : vector<1x1x8x1x8x128xbf16> to vector<8x8x128xbf16>
    %52 = vector.shape_cast %51 : vector<8x8x128xbf16> to vector<64x128xbf16>
    %c7 = arith.constant 7 : index
    %c0_68 = arith.constant 0 : index
    %c0_69 = arith.constant 0 : index
    %53 = vector.load %arg3[%c7, %c0_68, %c0_69] : memref<9x128x128xbf16, #tpu.memory_space<vmem>>, vector<1x128x128xbf16>
    %54 = vector.shape_cast %53 : vector<1x128x128xbf16> to vector<128x128xbf16>
    %cst_70 = arith.constant dense<0.000000e+00> : vector<64x128xf32>
    %55 = tpu.matmul %52, %54, %cst_70 {dimension_numbers = #tpu.dot_dimension_numbers<[1], [0], [0], [1], [0, 0, 1, 1], [], []>} : vector<64x128xbf16>, vector<128x128xbf16>, vector<64x128xf32> -> vector<64x128xf32>
    %56 = arith.addf %49, %55 : vector<64x128xf32>
    %c0_71 = arith.constant 0 : index
    %c0_72 = arith.constant 0 : index
    %c1_73 = arith.constant 1 : index
    %c0_74 = arith.constant 0 : index
    %c1_75 = arith.constant 1 : index
    %c0_76 = arith.constant 0 : index
    %57 = vector.load %arg2[%c0_71, %c0_72, %c1_73, %c0_74, %c1_75, %c0_76] : memref<1x1x9x2x9x256xbf16, #tpu.memory_space<vmem>>, vector<1x1x8x1x8x128xbf16>
    %58 = vector.shape_cast %57 : vector<1x1x8x1x8x128xbf16> to vector<8x8x128xbf16>
    %59 = vector.shape_cast %58 : vector<8x8x128xbf16> to vector<64x128xbf16>
    %c8 = arith.constant 8 : index
    %c0_77 = arith.constant 0 : index
    %c0_78 = arith.constant 0 : index
    %60 = vector.load %arg3[%c8, %c0_77, %c0_78] : memref<9x128x128xbf16, #tpu.memory_space<vmem>>, vector<1x128x128xbf16>
    %61 = vector.shape_cast %60 : vector<1x128x128xbf16> to vector<128x128xbf16>
    %cst_79 = arith.constant dense<0.000000e+00> : vector<64x128xf32>
    %62 = tpu.matmul %59, %61, %cst_79 {dimension_numbers = #tpu.dot_dimension_numbers<[1], [0], [0], [1], [0, 0, 1, 1], [], []>} : vector<64x128xbf16>, vector<128x128xbf16>, vector<64x128xf32> -> vector<64x128xf32>
    %63 = arith.addf %56, %62 : vector<64x128xf32>
    %c0_80 = arith.constant 0 : index
    %c0_81 = arith.constant 0 : index
    %64 = vector.load %arg4[%c0_80, %c0_81] : memref<1x128xf32, #tpu.memory_space<vmem>>, vector<1x128xf32>
    %65 = vector.broadcast %64 : vector<1x128xf32> to vector<64x128xf32>
    %66 = arith.addf %63, %65 : vector<64x128xf32>
    %cst_82 = arith.constant 0.000000e+00 : f32
    %67 = vector.broadcast %cst_82 : f32 to vector<64x128xf32>
    %68 = arith.cmpf ogt, %66, %67 : vector<64x128xf32>
    %cst_83 = arith.constant 0.00999999977 : f32
    %69 = vector.broadcast %cst_83 : f32 to vector<64x128xf32>
    %70 = arith.mulf %69, %66 : vector<64x128xf32>
    %71 = arith.select %68, %66, %70 : vector<64x128xi1>, vector<64x128xf32>
    %72 = arith.truncf %71 : vector<64x128xf32> to vector<64x128xbf16>
    %c0_84 = arith.constant 0 : index
    %c0_85 = arith.constant 0 : index
    %c0_86 = arith.constant 0 : index
    %c0_87 = arith.constant 0 : index
    %73 = vector.load %arg5[%c0_84, %c0_85, %c0_86, %c0_87] : memref<1x1x64x128xbf16, #tpu.memory_space<vmem>>, vector<1x1x64x128xbf16>
    %74 = vector.shape_cast %73 : vector<1x1x64x128xbf16> to vector<64x128xbf16>
    %75 = vector.shape_cast %72 : vector<64x128xbf16> to vector<1x1x64x128xbf16>
    tpu.vector_store %arg5[%c0_84, %c0_85, %c0_86, %c0_87], %75 {strides = array<i32>} : memref<1x1x64x128xbf16, #tpu.memory_space<vmem>>, vector<1x1x64x128xbf16>,
    return
  }
  func.func @transform_0(%arg0: i32, %arg1: i32) -> (i32, i32, i32, i32, i32, i32) {
    %c0_i32 = arith.constant 0 : i32
    %c0_i32_0 = arith.constant 0 : i32
    %c0_i32_1 = arith.constant 0 : i32
    %c0_i32_2 = arith.constant 0 : i32
    %c0_i32_3 = arith.constant 0 : i32
    return %arg0, %arg1, %c0_i32, %c0_i32_0, %c0_i32_1, %c0_i32_2 : i32, i32, i32, i32, i32, i32
  }
  func.func @transform_1(%arg0: i32, %arg1: i32) -> (i32, i32, i32) {
    %c0_i32 = arith.constant 0 : i32
    %c0_i32_0 = arith.constant 0 : i32
    %c0_i32_1 = arith.constant 0 : i32
    %c0_i32_2 = arith.constant 0 : i32
    return %c0_i32, %c0_i32_0, %c0_i32_1 : i32, i32, i32
  }
  func.func @transform_2(%arg0: i32, %arg1: i32) -> (i32, i32) {
    %c0_i32 = arith.constant 0 : i32
    %c0_i32_0 = arith.constant 0 : i32
    %c0_i32_1 = arith.constant 0 : i32
    return %c0_i32, %c0_i32_0 : i32, i32
  }
  func.func @transform_3(%arg0: i32, %arg1: i32) -> (i32, i32, i32, i32) {
    %c0_i32 = arith.constant 0 : i32
    %c0_i32_0 = arith.constant 0 : i32
    %c0_i32_1 = arith.constant 0 : i32
    return %arg0, %arg1, %c0_i32, %c0_i32_0 : i32, i32, i32, i32
  }
}

</mosaic_0001>

<llo_original>
// kernel: tpu_custom_call.1
$region0: #{tpu_custom_call.1}
  #allocation0 [shape = 'u32[]', space=smem, size = 0x4, offset = 0x4, fixed_abs, tag = 'smem constant byte address 0x4 - core index']
  #allocation1 [shape = 'u32[144,128]{1,0:T(1,128)}', space=vmem, size = 0x12000, scoped, tag = 'internal scratch']
  %s0 = inlined_call_operand.vmem [shape: bf16[2,1,9,2,9,256], index: 0, kind: input, shape index: {}]
  %s1 = inlined_call_operand.vmem [shape: bf16[9,128,128], index: 1, kind: input, shape index: {}]
  %s2 = inlined_call_operand.vmem [shape: f32[1,128], index: 2, kind: input, shape index: {}]
  %s3 = inlined_call_operand.hbm [shape: bf16[2,1,64,128], index: 3, kind: output, shape index: {}]
  %s4 = sld [smem:[#allocation0]]
  $region45: #{tpu_custom_call.1} parent=0
    _
  %s6 = ssub.s32 1, %s4
  %s7 = scalar_select 0, %s6, %s4
  $region1: #{tpu_custom_call.1} parent=0
    #allocation2 [shape = 'u8[32768]{0}', space=vmem, size = 0x8000, scoped, tag = 'output window, operand 0']
    #allocation3 [shape = 's32[2]{0}', space=sflag, size = 0x8, scoped, tag = 'scoped memory for tpu_custom_call.1']
    %8 = vsyncpa [#allocation3], 0
    %s9 = scalar_lea.sflag [#allocation3], 1
    %10 = vsyncpa %s9, 0
    loop: start=0, step=1, limit=4
    $region2: #{tpu_custom_call.1} parent=1 // loop_pre_header
      _
    $region3: #{tpu_custom_call.1} parent=1 // loop_header
      %s12 = sphi 0, %s16
      %p13 = scmp.ge.s32.totalorder %s12, 4
      %s19 = sphi 0, %s31
      %s20 = sphi 0, %s27
      %s21 = sphi 0, %s19
      %s22 = sphi 0, %s20
      %s23 = sphi 0, %s21
      %s24 = sphi 0, %s22
      %s36 = sphi 0, %s38
      %s39 = sphi 0, %s36
      %s40 = sphi 0, %s39
      %s56 = sphi 0, %s40
      %s60 = sphi 0, %s60
      %s62 = sphi 0, %s60
      %s63 = sphi 0, %s62
      %s77 = sphi 0, %s63
      %s81 = sphi 0, %s81
      %s83 = sphi 0, %s81
      %s84 = sphi 0, %s83
      %s98 = sphi 0, %s84
      %s106 = sphi 0, %s108
      %s109 = sphi 0, %s106
      %s110 = sphi 0, %s109
      %s126 = sphi 0, %s110
    $region4: #{tpu_custom_call.1} parent=1 // loop_header_branch
      %15 = sbr.rel (%p13) target = $region8
    $region5: #{tpu_custom_call.1} parent=1 // loop_body
      %s17 = ssub.s32 %s12, 1
      %s18 = ssub.s32 %s12, 2
      %s25 = sadd.s32 1, %s20
      %p26 = scmp.ge.s32.totalorder %s25, 1
      %s27 = scalar_select %p26, 0, %s25
      %s28 = sadd.s32 1, %s19
      %s29 = scalar_select %p26, %s28, %s19
      %p30 = scmp.ge.s32.totalorder %s29, 2
      %s31 = scalar_select %p30, 0, %s29
      %s32 = ssub.s32 %s19, %s31
      %s33 = ssub.s32 %s20, %s27
      %s34 = sor.u32 %s32, %s33
      %p35 = scmp.eq.s32.totalorder %s34, 0
      %s37 = sadd.s32 %s36, 1
      %s38 = scalar_select %p35, %s36, %s37
      %p41 = pneg %p35
      %p42 = scmp.eq.s32.totalorder %s12, 1
      %p43 = por %p41, %p42
      %p44 = scmp.ne.s32.totalorder %s36, %s39
      %p45 = scmp.eq.s32.totalorder %s12, 0
      %p46 = por %p44, %p45
      %p47 = scmp.ne.s32.totalorder %s36, %s39
      %p48 = scmp.eq.s32.totalorder %s17, 1
      %p49 = por %p47, %p48
      %p50 = scmp.ne.s32.totalorder %s39, %s40
      %p51 = scmp.eq.s32.totalorder %s17, 0
      %p52 = por %p50, %p51
      %p53 = scmp.ne.s32.totalorder %s39, %s40
      %p54 = scmp.eq.s32.totalorder %s18, 1
      %p55 = por %p53, %p54
      %p57 = scmp.ne.s32.totalorder %s40, %s56
      %p58 = scmp.eq.s32.totalorder %s18, 0
      %p59 = por %p57, %p58
      %s61 = sadd.s32 %s60, 1
      %p64 = scmp.eq.s32.totalorder %s12, 1
      %p65 = scmp.ne.s32.totalorder %s60, %s62
      %p66 = scmp.eq.s32.totalorder %s12, 0
      %p67 = por %p65, %p66
      %p68 = scmp.ne.s32.totalorder %s60, %s62
      %p69 = scmp.eq.s32.totalorder %s17, 1
      %p70 = por %p68, %p69
      %p71 = scmp.ne.s32.totalorder %s62, %s63
      %p72 = scmp.eq.s32.totalorder %s17, 0
      %p73 = por %p71, %p72
      %p74 = scmp.ne.s32.totalorder %s62, %s63
      %p75 = scmp.eq.s32.totalorder %s18, 1
      %p76 = por %p74, %p75
      %p78 = scmp.ne.s32.totalorder %s63, %s77
      %p79 = scmp.eq.s32.totalorder %s18, 0
      %p80 = por %p78, %p79
      %s82 = sadd.s32 %s81, 1
      %p85 = scmp.eq.s32.totalorder %s12, 1
      %p86 = scmp.ne.s32.totalorder %s81, %s83
      %p87 = scmp.eq.s32.totalorder %s12, 0
      %p88 = por %p86, %p87
      %p89 = scmp.ne.s32.totalorder %s81, %s83
      %p90 = scmp.eq.s32.totalorder %s17, 1
      %p91 = por %p89, %p90
      %p92 = scmp.ne.s32.totalorder %s83, %s84
      %p93 = scmp.eq.s32.totalorder %s17, 0
      %p94 = por %p92, %p93
      %p95 = scmp.ne.s32.totalorder %s83, %s84
      %p96 = scmp.eq.s32.totalorder %s18, 1
      %p97 = por %p95, %p96
      %p99 = scmp.ne.s32.totalorder %s84, %s98
      %p100 = scmp.eq.s32.totalorder %s18, 0
      %p101 = por %p99, %p100
      %s102 = ssub.s32 %s19, %s31
      %s103 = ssub.s32 %s20, %s27
      %s104 = sor.u32 %s102, %s103
      %p105 = scmp.eq.s32.totalorder %s104, 0
      %s107 = sadd.s32 %s106, 1
      %s108 = scalar_select %p105, %s106, %s107
      %p111 = pneg %p105
      %p112 = scmp.eq.s32.totalorder %s12, 1
      %p113 = por %p111, %p112
      %p114 = scmp.ne.s32.totalorder %s106, %s109
      %p115 = scmp.eq.s32.totalorder %s12, 0
      %p116 = por %p114, %p115
      %p117 = scmp.ne.s32.totalorder %s106, %s109
      %p118 = scmp.eq.s32.totalorder %s17, 1
      %p119 = por %p117, %p118
      %p120 = scmp.ne.s32.totalorder %s109, %s110
      %p121 = scmp.eq.s32.totalorder %s17, 0
      %p122 = por %p120, %p121
      %p123 = scmp.ne.s32.totalorder %s109, %s110
      %p124 = scmp.eq.s32.totalorder %s18, 1
      %p125 = por %p123, %p124
      %p127 = scmp.ne.s32.totalorder %s110, %s126
      %p128 = scmp.eq.s32.totalorder %s18, 0
      %p129 = por %p127, %p128
      %p130 = scmp.le.s32.totalorder 1, %s12
      %p131 = scmp.lt.s32.totalorder %s12, 3
      %p132 = pnand %p130, %p131
      %p133 = pneg %p132
      // Predicated region
      $region9: #{tpu_custom_call.1} parent=5 // pred_check
        _
      $region10: #{tpu_custom_call.1} parent=5 // pred_check_branch
        %135 = sbr.rel (%p132) target = $region12
      $region11: #{tpu_custom_call.1} parent=5 // pred_region
        %s136 = ssub.s32 %s12, 1
        // Predicated region
        $region13: #{tpu_custom_call.1} parent=11 // pred_check
          %p137 = pneg %p73
        $region14: #{tpu_custom_call.1} parent=11 // pred_check_branch
          %139 = sbr.rel (%p137) target = $region16
        $region15: #{tpu_custom_call.1} parent=11 // pred_region
          _
        $region16: #{tpu_custom_call.1} parent=11 // pred_fallthru
          _
        // Predicated region
        $region17: #{tpu_custom_call.1} parent=11 // pred_check
          %p140 = pneg %p94
        $region18: #{tpu_custom_call.1} parent=11 // pred_check_branch
          %142 = sbr.rel (%p140) target = $region20
        $region19: #{tpu_custom_call.1} parent=11 // pred_region
          _
        $region20: #{tpu_custom_call.1} parent=11 // pred_fallthru
          _
      $region12: #{tpu_custom_call.1} parent=5 // pred_fallthru
        _
      %p143 = scmp.lt.s32.totalorder %s12, 2
      // Predicated region
      $region21: #{tpu_custom_call.1} parent=5 // pred_check
        %p144 = pneg %p143
      $region22: #{tpu_custom_call.1} parent=5 // pred_check_branch
        %146 = sbr.rel (%p144) target = $region24
      $region23: #{tpu_custom_call.1} parent=5 // pred_region
        // Predicated region
        $region25: #{tpu_custom_call.1} parent=23 // pred_check
          %p147 = pneg %p46
        $region26: #{tpu_custom_call.1} parent=23 // pred_check_branch
          %149 = sbr.rel (%p147) target = $region28
        $region27: #{tpu_custom_call.1} parent=23 // pred_region
          %p150 = scmp.lt.s32.totalorder %s19, 1
          %s151 = scalar_select %p150, %s19, 1
          %p152 = scmp.lt.s32.totalorder %s20, 0
          %s153 = scalar_select %p152, %s20, 0
          %s154 = smul.addr %s153, 72
          %s155 = smul.addr %s151, 72
          %s156 = sadd.s32 %s154, %s155
          %s157 = smul.addr %s156, 4
          %s158 = scalar_lea.vmem %s0, %s157
        $region28: #{tpu_custom_call.1} parent=23 // pred_fallthru
          _
      $region24: #{tpu_custom_call.1} parent=5 // pred_fallthru
        _
      %p159 = scmp.le.s32.totalorder 1, %s12
      %p160 = scmp.lt.s32.totalorder %s12, 3
      %p161 = pnand %p159, %p160
      %p162 = pneg %p161
      // Predicated region
      $region29: #{tpu_custom_call.1} parent=5 // pred_check
        _
      $region30: #{tpu_custom_call.1} parent=5 // pred_check_branch
        %164 = sbr.rel (%p161) target = $region32
      $region31: #{tpu_custom_call.1} parent=5 // pred_region
        %s165 = ssub.s32 %s12, 1
        %p166 = scmp.lt.s32.totalorder %s21, 1
        %s167 = scalar_select %p166, %s21, 1
        %p168 = scmp.lt.s32.totalorder %s22, 0
        %s169 = scalar_select %p168, %s22, 0
        %s170 = smul.addr %s169, 72
        %s171 = smul.addr %s167, 72
        %s172 = sadd.s32 %s170, %s171
        %s173 = smul.addr %s172, 4
        %s174 = scalar_lea.vmem %s0, %s173
        %p175 = pneg %p52
        %p176 = pneg %p49
        %p177 = pneg %p73
        %p178 = pneg %p70
        %p179 = pneg %p94
        %p180 = pneg %p91
        %p181 = pneg %p122
        %p182 = pneg %p119
        %s183 = sand.u32 %s109, 1
        %s184 = scalar_lea.sflag [#allocation3], %s183
        %s185 = sand.u32 %s109, 1
        %s186 = smul.addr %s185, 32
        %s187 = scalar_lea.vmem [#allocation2], %s186
        %p188 = scmp.lt.s32.totalorder %s21, 1
        %s189 = scalar_select %p188, %s21, 1
        %p190 = scmp.lt.s32.totalorder %s22, 0
        %s191 = scalar_select %p190, %s22, 0
        %s192 = smul.addr %s191, 72
        %s193 = smul.addr %s189, 72
        %s194 = sadd.s32 %s192, %s193
        %s195 = smul.addr %s194, 4
        %s196 = scalar_lea.vmem %s0, %s195
        %v198 = vld [vmem:[%s196] sm:$0xf]
        %v199 = vld [vmem:[%s196 + $0x20] sm:$0xf]
        %v200 = vld [vmem:[%s196 + $0x40] sm:$0xf]
        %v201 = vld [vmem:[%s196 + $0x60] sm:$0xf]
        %v202 = vld [vmem:[%s196 + $0x80] sm:$0xf]
        %v203 = vld [vmem:[%s196 + $0xa0] sm:$0xf]
        %v204 = vld [vmem:[%s196 + $0xc0] sm:$0xf]
        %v205 = vld [vmem:[%s196 + $0xe0] sm:$0xf]
        %v206 = vld [vmem:[%s1] sm:$0xf]
        %v207 = vld [vmem:[%s1 + $0x4] sm:$0xf]
        %v208 = vld [vmem:[%s1 + $0x8] sm:$0xf]
        %v209 = vld [vmem:[%s1 + $0xc] sm:$0xf]
        %v210 = vld [vmem:[%s1 + $0x10] sm:$0xf]
        %v211 = vld [vmem:[%s1 + $0x14] sm:$0xf]
        %v212 = vld [vmem:[%s1 + $0x18] sm:$0xf]
        %v213 = vld [vmem:[%s1 + $0x1c] sm:$0xf]
        %v214 = vld [vmem:[%s1 + $0x20] sm:$0xf]
        %v215 = vld [vmem:[%s1 + $0x24] sm:$0xf]
        %v216 = vld [vmem:[%s1 + $0x28] sm:$0xf]
        %v217 = vld [vmem:[%s1 + $0x2c] sm:$0xf]
        %v218 = vld [vmem:[%s1 + $0x30] sm:$0xf]
        %v219 = vld [vmem:[%s1 + $0x34] sm:$0xf]
        %v220 = vld [vmem:[%s1 + $0x38] sm:$0xf]
        %v221 = vld [vmem:[%s1 + $0x3c] sm:$0xf]
        %v222 = vld [vmem:[%s196 + $0x4] sm:$0xf]
        %v223 = vld [vmem:[%s196 + $0x24] sm:$0xf]
        %v224 = vld [vmem:[%s196 + $0x44] sm:$0xf]
        %v225 = vld [vmem:[%s196 + $0x64] sm:$0xf]
        %v226 = vld [vmem:[%s196 + $0x84] sm:$0xf]
        %v227 = vld [vmem:[%s196 + $0xa4] sm:$0xf]
        %v228 = vld [vmem:[%s196 + $0xc4] sm:$0xf]
        %v229 = vld [vmem:[%s196 + $0xe4] sm:$0xf]
        %s230 = scalar_lea.vmem %s1, 64
        %v231 = vld [vmem:[%s230] sm:$0xf]
        %v232 = vld [vmem:[%s230 + $0x4] sm:$0xf]
        %v233 = vld [vmem:[%s230 + $0x8] sm:$0xf]
        %v234 = vld [vmem:[%s230 + $0xc] sm:$0xf]
        %v235 = vld [vmem:[%s230 + $0x10] sm:$0xf]
        %v236 = vld [vmem:[%s230 + $0x14] sm:$0xf]
        %v237 = vld [vmem:[%s230 + $0x18] sm:$0xf]
        %v238 = vld [vmem:[%s230 + $0x1c] sm:$0xf]
        %v239 = vld [vmem:[%s230 + $0x20] sm:$0xf]
        %v240 = vld [vmem:[%s230 + $0x24] sm:$0xf]
        %v241 = vld [vmem:[%s230 + $0x28] sm:$0xf]
        %v242 = vld [vmem:[%s230 + $0x2c] sm:$0xf]
        %v243 = vld [vmem:[%s230 + $0x30] sm:$0xf]
        %v244 = vld [vmem:[%s230 + $0x34] sm:$0xf]
        %v245 = vld [vmem:[%s230 + $0x38] sm:$0xf]
        %v246 = vld [vmem:[%s230 + $0x3c] sm:$0xf]
        %v255 = vunpack.c.l.b16 %v222
        %v256 = vunpack.c.l.b16 %v223
        %v257 = vunpack.c.l.b16 %v224
        %v258 = vunpack.c.l.b16 %v225
        %v259 = vunpack.c.l.b16 %v226
        %v260 = vunpack.c.l.b16 %v227
        %v261 = vunpack.c.l.b16 %v228
        %v262 = vunpack.c.l.b16 %v229
        %v263 = vpack.c.b16 %v256, %v255
        %v264 = vpack.c.b16 %v258, %v257
        %v265 = vpack.c.b16 %v260, %v259
        %v266 = vpack.c.b16 %v262, %v261
        %v287 = vunpack.c.l.b16 %v231
        %v288 = vunpack.c.l.b16 %v232
        %v289 = vunpack.c.l.b16 %v233
        %v290 = vunpack.c.l.b16 %v234
        %v291 = vunpack.c.l.b16 %v235
        %v292 = vunpack.c.l.b16 %v236
        %v293 = vunpack.c.l.b16 %v237
        %v294 = vunpack.c.l.b16 %v238
        %v295 = vunpack.c.l.b16 %v239
        %v296 = vunpack.c.l.b16 %v240
        %v297 = vunpack.c.l.b16 %v241
        %v298 = vunpack.c.l.b16 %v242
        %v299 = vunpack.c.l.b16 %v243
        %v300 = vunpack.c.l.b16 %v244
        %v301 = vunpack.c.l.b16 %v245
        %v302 = vunpack.c.l.b16 %v246
        %v303 = vpack.c.b16 %v288, %v287
        %v304 = vpack.c.b16 %v290, %v289
        %v305 = vpack.c.b16 %v292, %v291
        %v306 = vpack.c.b16 %v294, %v293
        %v307 = vpack.c.b16 %v296, %v295
        %v308 = vpack.c.b16 %v298, %v297
        %v309 = vpack.c.b16 %v300, %v299
        %v310 = vpack.c.b16 %v302, %v301
        %319 = vmatprep.subr.bf16.mxu0 0
        %320 = vmatpush1.bf16.msra.mxu0 %v310
        %321 = vmatprep.subr.bf16.mxu0 0
        %322 = vmatpush1.bf16.msra.mxu0 %v309
        %323 = vmatprep.subr.bf16.mxu0 0
        %324 = vmatpush1.bf16.msra.mxu0 %v308
        %325 = vmatprep.subr.bf16.mxu0 0
        %326 = vmatpush1.bf16.msra.mxu0 %v307
        %327 = vmatprep.subr.bf16.mxu0 0
        %328 = vmatpush1.bf16.msra.mxu0 %v306
        %329 = vmatprep.subr.bf16.mxu0 0
        %330 = vmatpush1.bf16.msra.mxu0 %v305
        %331 = vmatprep.subr.bf16.mxu0 0
        %332 = vmatpush1.bf16.msra.mxu0 %v304
        %333 = vmatprep.subr.bf16.mxu0 0
        %334 = vmatpush1.bf16.msra.mxu0 %v303
        %335 = vmatprep.subr.bf16.mxu0 0
        %336 = vmatpush2.bf16.msra.mxu0 0
        %337 = vmatprep.subr.bf16.mxu0 0
        %338 = vmatpush2.bf16.msra.mxu0 0
        %339 = vmatprep.subr.bf16.mxu0 0
        %340 = vmatpush2.bf16.msra.mxu0 0
        %341 = vmatprep.subr.bf16.mxu0 0
        %342 = vmatpush2.bf16.msra.mxu0 0
        %343 = vmatprep.subr.bf16.mxu0 0
        %344 = vmatpush2.bf16.msra.mxu0 0
        %345 = vmatprep.subr.bf16.mxu0 0
        %346 = vmatpush2.bf16.msra.mxu0 0
        %347 = vmatprep.subr.bf16.mxu0 0
        %348 = vmatpush2.bf16.msra.mxu0 0
        %349 = vmatprep.subr.bf16.mxu0 0
        %350 = vmatpush2.bf16.msra.mxu0 0
        %351 = vmatprep.mubr.bf16.mxu0 0
        %352 = vmatmul.mubr.bf16.gmra.mxu0 %v263
        %v353 = vpop.f32.mrf.mxu0
        %v354 = vadd.f32 0.0, %v353
        %v355 = vpop.f32.mrf.mxu0
        %v356 = vpop.f32.mrf.mxu0
        %v357 = vadd.f32 0.0, %v356
        %v358 = vpop.f32.mrf.mxu0
        %359 = vmatprep.mubr.bf16.mxu0 0
        %360 = vmatmul.mubr.bf16.gmra.mxu0 %v264
        %v361 = vpop.f32.mrf.mxu0
        %v362 = vadd.f32 0.0, %v361
        %v363 = vpop.f32.mrf.mxu0
        %v364 = vpop.f32.mrf.mxu0
        %v365 = vadd.f32 0.0, %v364
        %v366 = vpop.f32.mrf.mxu0
        %367 = vmatprep.mubr.bf16.mxu0 0
        %368 = vmatmul.mubr.bf16.gmra.mxu0 %v265
        %v369 = vpop.f32.mrf.mxu0
        %v370 = vadd.f32 0.0, %v369
        %v371 = vpop.f32.mrf.mxu0
        %v372 = vpop.f32.mrf.mxu0
        %v373 = vadd.f32 0.0, %v372
        %v374 = vpop.f32.mrf.mxu0
        %375 = vmatprep.mubr.bf16.mxu0 0
        %376 = vmatmul.mubr.bf16.gmra.mxu0 %v266
        %v377 = vpop.f32.mrf.mxu0
        %v378 = vadd.f32 0.0, %v377
        %v379 = vpop.f32.mrf.mxu0
        %v380 = vpop.f32.mrf.mxu0
        %v381 = vadd.f32 0.0, %v380
        %v382 = vpop.f32.mrf.mxu0
        %383 = vdwg.mxu0
        %v392 = vunpack.c.l.b16 %v198
        %v393 = vunpack.c.l.b16 %v199
        %v394 = vunpack.c.l.b16 %v200
        %v395 = vunpack.c.l.b16 %v201
        %v396 = vunpack.c.l.b16 %v202
        %v397 = vunpack.c.l.b16 %v203
        %v398 = vunpack.c.l.b16 %v204
        %v399 = vunpack.c.l.b16 %v205
        %v400 = vpack.c.b16 %v393, %v392
        %v401 = vpack.c.b16 %v395, %v394
        %v402 = vpack.c.b16 %v397, %v396
        %v403 = vpack.c.b16 %v399, %v398
        %v424 = vunpack.c.l.b16 %v206
        %v425 = vunpack.c.l.b16 %v207
        %v426 = vunpack.c.l.b16 %v208
        %v427 = vunpack.c.l.b16 %v209
        %v428 = vunpack.c.l.b16 %v210
        %v429 = vunpack.c.l.b16 %v211
        %v430 = vunpack.c.l.b16 %v212
        %v431 = vunpack.c.l.b16 %v213
        %v432 = vunpack.c.l.b16 %v214
        %v433 = vunpack.c.l.b16 %v215
        %v434 = vunpack.c.l.b16 %v216
        %v435 = vunpack.c.l.b16 %v217
        %v436 = vunpack.c.l.b16 %v218
        %v437 = vunpack.c.l.b16 %v219
        %v438 = vunpack.c.l.b16 %v220
        %v439 = vunpack.c.l.b16 %v221
        %v440 = vpack.c.b16 %v425, %v424
        %v441 = vpack.c.b16 %v427, %v426
        %v442 = vpack.c.b16 %v429, %v428
        %v443 = vpack.c.b16 %v431, %v430
        %v444 = vpack.c.b16 %v433, %v432
        %v445 = vpack.c.b16 %v435, %v434
        %v446 = vpack.c.b16 %v437, %v436
        %v447 = vpack.c.b16 %v439, %v438
        %456 = vmatprep.subr.bf16.mxu0 0
        %457 = vmatpush1.bf16.msra.mxu0 %v447
        %458 = vmatprep.subr.bf16.mxu0 0
        %459 = vmatpush1.bf16.msra.mxu0 %v446
        %460 = vmatprep.subr.bf16.mxu0 0
        %461 = vmatpush1.bf16.msra.mxu0 %v445
        %462 = vmatprep.subr.bf16.mxu0 0
        %463 = vmatpush1.bf16.msra.mxu0 %v444
        %464 = vmatprep.subr.bf16.mxu0 0
        %465 = vmatpush1.bf16.msra.mxu0 %v443
        %466 = vmatprep.subr.bf16.mxu0 0
        %467 = vmatpush1.bf16.msra.mxu0 %v442
        %468 = vmatprep.subr.bf16.mxu0 0
        %469 = vmatpush1.bf16.msra.mxu0 %v441
        %470 = vmatprep.subr.bf16.mxu0 0
        %471 = vmatpush1.bf16.msra.mxu0 %v440
        %472 = vmatprep.subr.bf16.mxu0 0
        %473 = vmatpush2.bf16.msra.mxu0 0
        %474 = vmatprep.subr.bf16.mxu0 0
        %475 = vmatpush2.bf16.msra.mxu0 0
        %476 = vmatprep.subr.bf16.mxu0 0
        %477 = vmatpush2.bf16.msra.mxu0 0
        %478 = vmatprep.subr.bf16.mxu0 0
        %479 = vmatpush2.bf16.msra.mxu0 0
        %480 = vmatprep.subr.bf16.mxu0 0
        %481 = vmatpush2.bf16.msra.mxu0 0
        %482 = vmatprep.subr.bf16.mxu0 0
        %483 = vmatpush2.bf16.msra.mxu0 0
        %484 = vmatprep.subr.bf16.mxu0 0
        %485 = vmatpush2.bf16.msra.mxu0 0
        %486 = vmatprep.subr.bf16.mxu0 0
        %487 = vmatpush2.bf16.msra.mxu0 0
        %488 = vmatprep.mubr.bf16.mxu0 0
        %489 = vmatmul.mubr.bf16.gmra.mxu0 %v400
        %v490 = vpop.f32.mrf.mxu0
        %v491 = vadd.f32 %v354, %v490
        %v492 = vpop.f32.mrf.mxu0
        %v493 = vpop.f32.mrf.mxu0
        %v494 = vadd.f32 %v357, %v493
        %v495 = vpop.f32.mrf.mxu0
        %496 = vmatprep.mubr.bf16.mxu0 0
        %497 = vmatmul.mubr.bf16.gmra.mxu0 %v401
        %v498 = vpop.f32.mrf.mxu0
        %v499 = vadd.f32 %v362, %v498
        %v500 = vpop.f32.mrf.mxu0
        %v501 = vpop.f32.mrf.mxu0
        %v502 = vadd.f32 %v365, %v501
        %v503 = vpop.f32.mrf.mxu0
        %504 = vmatprep.mubr.bf16.mxu0 0
        %505 = vmatmul.mubr.bf16.gmra.mxu0 %v402
        %v506 = vpop.f32.mrf.mxu0
        %v507 = vadd.f32 %v370, %v506
        %v508 = vpop.f32.mrf.mxu0
        %v509 = vpop.f32.mrf.mxu0
        %v510 = vadd.f32 %v373, %v509
        %v511 = vpop.f32.mrf.mxu0
        %512 = vmatprep.mubr.bf16.mxu0 0
        %513 = vmatmul.mubr.bf16.gmra.mxu0 %v403
        %v514 = vpop.f32.mrf.mxu0
        %v515 = vadd.f32 %v378, %v514
        %v516 = vpop.f32.mrf.mxu0
        %v517 = vpop.f32.mrf.mxu0
        %v518 = vadd.f32 %v381, %v517
        %v519 = vpop.f32.mrf.mxu0
        %520 = vdwg.mxu0
        %v521 = vld [vmem:[%s196] sm:$0xf]
        %v522 = vld [vmem:[%s196 + $0x8] sm:$0x1]
        %v523 = vld [vmem:[%s196 + $0x20] sm:$0xf]
        %v524 = vld [vmem:[%s196 + $0x28] sm:$0x1]
        %v525 = vld [vmem:[%s196 + $0x40] sm:$0xf]
        %v526 = vld [vmem:[%s196 + $0x48] sm:$0x1]
        %v527 = vld [vmem:[%s196 + $0x60] sm:$0xf]
        %v528 = vld [vmem:[%s196 + $0x68] sm:$0x1]
        %v529 = vld [vmem:[%s196 + $0x80] sm:$0xf]
        %v530 = vld [vmem:[%s196 + $0x88] sm:$0x1]
        %v531 = vld [vmem:[%s196 + $0xa0] sm:$0xf]
        %v532 = vld [vmem:[%s196 + $0xa8] sm:$0x1]
        %v533 = vld [vmem:[%s196 + $0xc0] sm:$0xf]
        %v534 = vld [vmem:[%s196 + $0xc8] sm:$0x1]
        %v535 = vld [vmem:[%s196 + $0xe0] sm:$0xf]
        %v536 = vld [vmem:[%s196 + $0xe8] sm:$0x1]
        %vm537 = vsmask.f32 3328
        %vm538 = vsmask.f32 7440
        %vm539 = vmor %vm537, %vm538
        %v541 = vshrl.u32 %v521, 16
        %v543 = vrot.slane %v541, 4
        %v544 = vshll.u32 %v521, 16
        %v546 = vrot.slane %v544, 5
        %v547 = vor.u32 %v543, %v546
        %v548 = vrot.slane %v547, 4
        %v550 = vshll.u32 %v522, 16
        %v552 = vrot.slane %v550, 5
        %v553 = vsel %vm539, %v548, %v552
        %v555 = vshrl.u32 %v523, 16
        %v557 = vrot.slane %v555, 4
        %v558 = vshll.u32 %v523, 16
        %v560 = vrot.slane %v558, 5
        %v561 = vor.u32 %v557, %v560
        %v562 = vrot.slane %v561, 4
        %v564 = vshll.u32 %v524, 16
        %v566 = vrot.slane %v564, 5
        %v567 = vsel %vm539, %v562, %v566
        %v569 = vshrl.u32 %v525, 16
        %v571 = vrot.slane %v569, 4
        %v572 = vshll.u32 %v525, 16
        %v574 = vrot.slane %v572, 5
        %v575 = vor.u32 %v571, %v574
        %v576 = vrot.slane %v575, 4
        %v578 = vshll.u32 %v526, 16
        %v580 = vrot.slane %v578, 5
        %v581 = vsel %vm539, %v576, %v580
        %v583 = vshrl.u32 %v527, 16
        %v585 = vrot.slane %v583, 4
        %v586 = vshll.u32 %v527, 16
        %v588 = vrot.slane %v586, 5
        %v589 = vor.u32 %v585, %v588
        %v590 = vrot.slane %v589, 4
        %v592 = vshll.u32 %v528, 16
        %v594 = vrot.slane %v592, 5
        %v595 = vsel %vm539, %v590, %v594
        %v597 = vshrl.u32 %v529, 16
        %v599 = vrot.slane %v597, 4
        %v600 = vshll.u32 %v529, 16
        %v602 = vrot.slane %v600, 5
        %v603 = vor.u32 %v599, %v602
        %v604 = vrot.slane %v603, 4
        %v606 = vshll.u32 %v530, 16
        %v608 = vrot.slane %v606, 5
        %v609 = vsel %vm539, %v604, %v608
        %v611 = vshrl.u32 %v531, 16
        %v613 = vrot.slane %v611, 4
        %v614 = vshll.u32 %v531, 16
        %v616 = vrot.slane %v614, 5
        %v617 = vor.u32 %v613, %v616
        %v618 = vrot.slane %v617, 4
        %v620 = vshll.u32 %v532, 16
        %v622 = vrot.slane %v620, 5
        %v623 = vsel %vm539, %v618, %v622
        %v625 = vshrl.u32 %v533, 16
        %v627 = vrot.slane %v625, 4
        %v628 = vshll.u32 %v533, 16
        %v630 = vrot.slane %v628, 5
        %v631 = vor.u32 %v627, %v630
        %v632 = vrot.slane %v631, 4
        %v634 = vshll.u32 %v534, 16
        %v636 = vrot.slane %v634, 5
        %v637 = vsel %vm539, %v632, %v636
        %v639 = vshrl.u32 %v535, 16
        %v641 = vrot.slane %v639, 4
        %v642 = vshll.u32 %v535, 16
        %v644 = vrot.slane %v642, 5
        %v645 = vor.u32 %v641, %v644
        %v646 = vrot.slane %v645, 4
        %v648 = vshll.u32 %v536, 16
        %v650 = vrot.slane %v648, 5
        %v651 = vsel %vm539, %v646, %v650
        %s652 = scalar_lea.vmem %s1, 128
        %v653 = vld [vmem:[%s652] sm:$0xf]
        %v654 = vld [vmem:[%s652 + $0x4] sm:$0xf]
        %v655 = vld [vmem:[%s652 + $0x8] sm:$0xf]
        %v656 = vld [vmem:[%s652 + $0xc] sm:$0xf]
        %v657 = vld [vmem:[%s652 + $0x10] sm:$0xf]
        %v658 = vld [vmem:[%s652 + $0x14] sm:$0xf]
        %v659 = vld [vmem:[%s652 + $0x18] sm:$0xf]
        %v660 = vld [vmem:[%s652 + $0x1c] sm:$0xf]
        %v661 = vld [vmem:[%s652 + $0x20] sm:$0xf]
        %v662 = vld [vmem:[%s652 + $0x24] sm:$0xf]
        %v663 = vld [vmem:[%s652 + $0x28] sm:$0xf]
        %v664 = vld [vmem:[%s652 + $0x2c] sm:$0xf]
        %v665 = vld [vmem:[%s652 + $0x30] sm:$0xf]
        %v666 = vld [vmem:[%s652 + $0x34] sm:$0xf]
        %v667 = vld [vmem:[%s652 + $0x38] sm:$0xf]
        %v668 = vld [vmem:[%s652 + $0x3c] sm:$0xf]
        %v669 = vunpack.c.l.b16 %v553
        %v670 = vunpack.c.l.b16 %v567
        %v671 = vunpack.c.l.b16 %v581
        %v672 = vunpack.c.l.b16 %v595
        %v673 = vunpack.c.l.b16 %v609
        %v674 = vunpack.c.l.b16 %v623
        %v675 = vunpack.c.l.b16 %v637
        %v676 = vunpack.c.l.b16 %v651
        %v677 = vpack.c.b16 %v670, %v669
        %v678 = vpack.c.b16 %v672, %v671
        %v679 = vpack.c.b16 %v674, %v673
        %v680 = vpack.c.b16 %v676, %v675
        %v701 = vunpack.c.l.b16 %v653
        %v702 = vunpack.c.l.b16 %v654
        %v703 = vunpack.c.l.b16 %v655
        %v704 = vunpack.c.l.b16 %v656
        %v705 = vunpack.c.l.b16 %v657
        %v706 = vunpack.c.l.b16 %v658
        %v707 = vunpack.c.l.b16 %v659
        %v708 = vunpack.c.l.b16 %v660
        %v709 = vunpack.c.l.b16 %v661
        %v710 = vunpack.c.l.b16 %v662
        %v711 = vunpack.c.l.b16 %v663
        %v712 = vunpack.c.l.b16 %v664
        %v713 = vunpack.c.l.b16 %v665
        %v714 = vunpack.c.l.b16 %v666
        %v715 = vunpack.c.l.b16 %v667
        %v716 = vunpack.c.l.b16 %v668
        %v717 = vpack.c.b16 %v702, %v701
        %v718 = vpack.c.b16 %v704, %v703
        %v719 = vpack.c.b16 %v706, %v705
        %v720 = vpack.c.b16 %v708, %v707
        %v721 = vpack.c.b16 %v710, %v709
        %v722 = vpack.c.b16 %v712, %v711
        %v723 = vpack.c.b16 %v714, %v713
        %v724 = vpack.c.b16 %v716, %v715
        %733 = vmatprep.subr.bf16.mxu0 0
        %734 = vmatpush1.bf16.msra.mxu0 %v724
        %735 = vmatprep.subr.bf16.mxu0 0
        %736 = vmatpush1.bf16.msra.mxu0 %v723
        %737 = vmatprep.subr.bf16.mxu0 0
        %738 = vmatpush1.bf16.msra.mxu0 %v722
        %739 = vmatprep.subr.bf16.mxu0 0
        %740 = vmatpush1.bf16.msra.mxu0 %v721
        %741 = vmatprep.subr.bf16.mxu0 0
        %742 = vmatpush1.bf16.msra.mxu0 %v720
        %743 = vmatprep.subr.bf16.mxu0 0
        %744 = vmatpush1.bf16.msra.mxu0 %v719
        %745 = vmatprep.subr.bf16.mxu0 0
        %746 = vmatpush1.bf16.msra.mxu0 %v718
        %747 = vmatprep.subr.bf16.mxu0 0
        %748 = vmatpush1.bf16.msra.mxu0 %v717
        %749 = vmatprep.subr.bf16.mxu0 0
        %750 = vmatpush2.bf16.msra.mxu0 0
        %751 = vmatprep.subr.bf16.mxu0 0
        %752 = vmatpush2.bf16.msra.mxu0 0
        %753 = vmatprep.subr.bf16.mxu0 0
        %754 = vmatpush2.bf16.msra.mxu0 0
        %755 = vmatprep.subr.bf16.mxu0 0
        %756 = vmatpush2.bf16.msra.mxu0 0
        %757 = vmatprep.subr.bf16.mxu0 0
        %758 = vmatpush2.bf16.msra.mxu0 0
        %759 = vmatprep.subr.bf16.mxu0 0
        %760 = vmatpush2.bf16.msra.mxu0 0
        %761 = vmatprep.subr.bf16.mxu0 0
        %762 = vmatpush2.bf16.msra.mxu0 0
        %763 = vmatprep.subr.bf16.mxu0 0
        %764 = vmatpush2.bf16.msra.mxu0 0
        %765 = vmatprep.mubr.bf16.mxu0 0
        %766 = vmatmul.mubr.bf16.gmra.mxu0 %v677
        %v767 = vpop.f32.mrf.mxu0
        %v768 = vadd.f32 0.0, %v767
        %v769 = vpop.f32.mrf.mxu0
        %v770 = vpop.f32.mrf.mxu0
        %v771 = vadd.f32 0.0, %v770
        %v772 = vpop.f32.mrf.mxu0
        %773 = vmatprep.mubr.bf16.mxu0 0
        %774 = vmatmul.mubr.bf16.gmra.mxu0 %v678
        %v775 = vpop.f32.mrf.mxu0
        %v776 = vadd.f32 0.0, %v775
        %v777 = vpop.f32.mrf.mxu0
        %v778 = vpop.f32.mrf.mxu0
        %v779 = vadd.f32 0.0, %v778
        %v780 = vpop.f32.mrf.mxu0
        %781 = vmatprep.mubr.bf16.mxu0 0
        %782 = vmatmul.mubr.bf16.gmra.mxu0 %v679
        %v783 = vpop.f32.mrf.mxu0
        %v784 = vadd.f32 0.0, %v783
        %v785 = vpop.f32.mrf.mxu0
        %v786 = vpop.f32.mrf.mxu0
        %v787 = vadd.f32 0.0, %v786
        %v788 = vpop.f32.mrf.mxu0
        %789 = vmatprep.mubr.bf16.mxu0 0
        %790 = vmatmul.mubr.bf16.gmra.mxu0 %v680
        %v791 = vpop.f32.mrf.mxu0
        %v792 = vadd.f32 0.0, %v791
        %v793 = vpop.f32.mrf.mxu0
        %v794 = vpop.f32.mrf.mxu0
        %v795 = vadd.f32 0.0, %v794
        %v796 = vpop.f32.mrf.mxu0
        %797 = vdwg.mxu0
        %v798 = vadd.f32 %v491, %v768
        %v799 = vadd.f32 %v494, %v771
        %v800 = vadd.f32 %v499, %v776
        %v801 = vadd.f32 %v502, %v779
        %v802 = vadd.f32 %v507, %v784
        %v803 = vadd.f32 %v510, %v787
        %v804 = vadd.f32 %v515, %v792
        %v805 = vadd.f32 %v518, %v795
        %s806 = scalar_lea.vmem %s196, 16
        %v807 = vld [vmem:[%s806] sm:$0xf]
        %v808 = vld [vmem:[%s806 + $0x20] sm:$0xf]
        %v809 = vld [vmem:[%s806 + $0x40] sm:$0xf]
        %v810 = vld [vmem:[%s806 + $0x60] sm:$0xf]
        %v811 = vld [vmem:[%s806 + $0x80] sm:$0xf]
        %v812 = vld [vmem:[%s806 + $0xa0] sm:$0xf]
        %v813 = vld [vmem:[%s806 + $0xc0] sm:$0xf]
        %v814 = vld [vmem:[%s806 + $0xe0] sm:$0xf]
        %s815 = scalar_lea.vmem %s1, 192
        %v816 = vld [vmem:[%s815] sm:$0xf]
        %v817 = vld [vmem:[%s815 + $0x4] sm:$0xf]
        %v818 = vld [vmem:[%s815 + $0x8] sm:$0xf]
        %v819 = vld [vmem:[%s815 + $0xc] sm:$0xf]
        %v820 = vld [vmem:[%s815 + $0x10] sm:$0xf]
        %v821 = vld [vmem:[%s815 + $0x14] sm:$0xf]
        %v822 = vld [vmem:[%s815 + $0x18] sm:$0xf]
        %v823 = vld [vmem:[%s815 + $0x1c] sm:$0xf]
        %v824 = vld [vmem:[%s815 + $0x20] sm:$0xf]
        %v825 = vld [vmem:[%s815 + $0x24] sm:$0xf]
        %v826 = vld [vmem:[%s815 + $0x28] sm:$0xf]
        %v827 = vld [vmem:[%s815 + $0x2c] sm:$0xf]
        %v828 = vld [vmem:[%s815 + $0x30] sm:$0xf]
        %v829 = vld [vmem:[%s815 + $0x34] sm:$0xf]
        %v830 = vld [vmem:[%s815 + $0x38] sm:$0xf]
        %v831 = vld [vmem:[%s815 + $0x3c] sm:$0xf]
        %v840 = vunpack.c.l.b16 %v807
        %v841 = vunpack.c.l.b16 %v808
        %v842 = vunpack.c.l.b16 %v809
        %v843 = vunpack.c.l.b16 %v810
        %v844 = vunpack.c.l.b16 %v811
        %v845 = vunpack.c.l.b16 %v812
        %v846 = vunpack.c.l.b16 %v813
        %v847 = vunpack.c.l.b16 %v814
        %v848 = vpack.c.b16 %v841, %v840
        %v849 = vpack.c.b16 %v843, %v842
        %v850 = vpack.c.b16 %v845, %v844
        %v851 = vpack.c.b16 %v847, %v846
        %v872 = vunpack.c.l.b16 %v816
        %v873 = vunpack.c.l.b16 %v817
        %v874 = vunpack.c.l.b16 %v818
        %v875 = vunpack.c.l.b16 %v819
        %v876 = vunpack.c.l.b16 %v820
        %v877 = vunpack.c.l.b16 %v821
        %v878 = vunpack.c.l.b16 %v822
        %v879 = vunpack.c.l.b16 %v823
        %v880 = vunpack.c.l.b16 %v824
        %v881 = vunpack.c.l.b16 %v825
        %v882 = vunpack.c.l.b16 %v826
        %v883 = vunpack.c.l.b16 %v827
        %v884 = vunpack.c.l.b16 %v828
        %v885 = vunpack.c.l.b16 %v829
        %v886 = vunpack.c.l.b16 %v830
        %v887 = vunpack.c.l.b16 %v831
        %v888 = vpack.c.b16 %v873, %v872
        %v889 = vpack.c.b16 %v875, %v874
        %v890 = vpack.c.b16 %v877, %v876
        %v891 = vpack.c.b16 %v879, %v878
        %v892 = vpack.c.b16 %v881, %v880
        %v893 = vpack.c.b16 %v883, %v882
        %v894 = vpack.c.b16 %v885, %v884
        %v895 = vpack.c.b16 %v887, %v886
        %904 = vmatprep.subr.bf16.mxu0 0
        %905 = vmatpush1.bf16.msra.mxu0 %v895
        %906 = vmatprep.subr.bf16.mxu0 0
        %907 = vmatpush1.bf16.msra.mxu0 %v894
        %908 = vmatprep.subr.bf16.mxu0 0
        %909 = vmatpush1.bf16.msra.mxu0 %v893
        %910 = vmatprep.subr.bf16.mxu0 0
        %911 = vmatpush1.bf16.msra.mxu0 %v892
        %912 = vmatprep.subr.bf16.mxu0 0
        %913 = vmatpush1.bf16.msra.mxu0 %v891
        %914 = vmatprep.subr.bf16.mxu0 0
        %915 = vmatpush1.bf16.msra.mxu0 %v890
        %916 = vmatprep.subr.bf16.mxu0 0
        %917 = vmatpush1.bf16.msra.mxu0 %v889
        %918 = vmatprep.subr.bf16.mxu0 0
        %919 = vmatpush1.bf16.msra.mxu0 %v888
        %920 = vmatprep.subr.bf16.mxu0 0
        %921 = vmatpush2.bf16.msra.mxu0 0
        %922 = vmatprep.subr.bf16.mxu0 0
        %923 = vmatpush2.bf16.msra.mxu0 0
        %924 = vmatprep.subr.bf16.mxu0 0
        %925 = vmatpush2.bf16.msra.mxu0 0
        %926 = vmatprep.subr.bf16.mxu0 0
        %927 = vmatpush2.bf16.msra.mxu0 0
        %928 = vmatprep.subr.bf16.mxu0 0
        %929 = vmatpush2.bf16.msra.mxu0 0
        %930 = vmatprep.subr.bf16.mxu0 0
        %931 = vmatpush2.bf16.msra.mxu0 0
        %932 = vmatprep.subr.bf16.mxu0 0
        %933 = vmatpush2.bf16.msra.mxu0 0
        %934 = vmatprep.subr.bf16.mxu0 0
        %935 = vmatpush2.bf16.msra.mxu0 0
        %936 = vmatprep.mubr.bf16.mxu0 0
        %937 = vmatmul.mubr.bf16.gmra.mxu0 %v848
        %v938 = vpop.f32.mrf.mxu0
        %v939 = vadd.f32 0.0, %v938
        %v940 = vpop.f32.mrf.mxu0
        %v941 = vpop.f32.mrf.mxu0
        %v942 = vadd.f32 0.0, %v941
        %v943 = vpop.f32.mrf.mxu0
        %944 = vmatprep.mubr.bf16.mxu0 0
        %945 = vmatmul.mubr.bf16.gmra.mxu0 %v849
        %v946 = vpop.f32.mrf.mxu0
        %v947 = vadd.f32 0.0, %v946
        %v948 = vpop.f32.mrf.mxu0
        %v949 = vpop.f32.mrf.mxu0
        %v950 = vadd.f32 0.0, %v949
        %v951 = vpop.f32.mrf.mxu0
        %952 = vmatprep.mubr.bf16.mxu0 0
        %953 = vmatmul.mubr.bf16.gmra.mxu0 %v850
        %v954 = vpop.f32.mrf.mxu0
        %v955 = vadd.f32 0.0, %v954
        %v956 = vpop.f32.mrf.mxu0
        %v957 = vpop.f32.mrf.mxu0
        %v958 = vadd.f32 0.0, %v957
        %v959 = vpop.f32.mrf.mxu0
        %960 = vmatprep.mubr.bf16.mxu0 0
        %961 = vmatmul.mubr.bf16.gmra.mxu0 %v851
        %v962 = vpop.f32.mrf.mxu0
        %v963 = vadd.f32 0.0, %v962
        %v964 = vpop.f32.mrf.mxu0
        %v965 = vpop.f32.mrf.mxu0
        %v966 = vadd.f32 0.0, %v965
        %v967 = vpop.f32.mrf.mxu0
        %968 = vdwg.mxu0
        %v969 = vadd.f32 %v798, %v939
        %v970 = vadd.f32 %v799, %v942
        %v971 = vadd.f32 %v800, %v947
        %v972 = vadd.f32 %v801, %v950
        %v973 = vadd.f32 %v802, %v955
        %v974 = vadd.f32 %v803, %v958
        %v975 = vadd.f32 %v804, %v963
        %v976 = vadd.f32 %v805, %v966
        %v977 = vld [vmem:[%s806 + $0x4] sm:$0xf]
        %v978 = vld [vmem:[%s806 + $0x24] sm:$0xf]
        %v979 = vld [vmem:[%s806 + $0x44] sm:$0xf]
        %v980 = vld [vmem:[%s806 + $0x64] sm:$0xf]
        %v981 = vld [vmem:[%s806 + $0x84] sm:$0xf]
        %v982 = vld [vmem:[%s806 + $0xa4] sm:$0xf]
        %v983 = vld [vmem:[%s806 + $0xc4] sm:$0xf]
        %v984 = vld [vmem:[%s806 + $0xe4] sm:$0xf]
        %s985 = scalar_lea.vmem %s1, 256
        %v986 = vld [vmem:[%s985] sm:$0xf]
        %v987 = vld [vmem:[%s985 + $0x4] sm:$0xf]
        %v988 = vld [vmem:[%s985 + $0x8] sm:$0xf]
        %v989 = vld [vmem:[%s985 + $0xc] sm:$0xf]
        %v990 = vld [vmem:[%s985 + $0x10] sm:$0xf]
        %v991 = vld [vmem:[%s985 + $0x14] sm:$0xf]
        %v992 = vld [vmem:[%s985 + $0x18] sm:$0xf]
        %v993 = vld [vmem:[%s985 + $0x1c] sm:$0xf]
        %v994 = vld [vmem:[%s985 + $0x20] sm:$0xf]
        %v995 = vld [vmem:[%s985 + $0x24] sm:$0xf]
        %v996 = vld [vmem:[%s985 + $0x28] sm:$0xf]
        %v997 = vld [vmem:[%s985 + $0x2c] sm:$0xf]
        %v998 = vld [vmem:[%s985 + $0x30] sm:$0xf]
        %v999 = vld [vmem:[%s985 + $0x34] sm:$0xf]
        %v1000 = vld [vmem:[%s985 + $0x38] sm:$0xf]
        %v1001 = vld [vmem:[%s985 + $0x3c] sm:$0xf]
        %v1010 = vunpack.c.l.b16 %v977
        %v1011 = vunpack.c.l.b16 %v978
        %v1012 = vunpack.c.l.b16 %v979
        %v1013 = vunpack.c.l.b16 %v980
        %v1014 = vunpack.c.l.b16 %v981
        %v1015 = vunpack.c.l.b16 %v982
        %v1016 = vunpack.c.l.b16 %v983
        %v1017 = vunpack.c.l.b16 %v984
        %v1018 = vpack.c.b16 %v1011, %v1010
        %v1019 = vpack.c.b16 %v1013, %v1012
        %v1020 = vpack.c.b16 %v1015, %v1014
        %v1021 = vpack.c.b16 %v1017, %v1016
        %v1042 = vunpack.c.l.b16 %v986
        %v1043 = vunpack.c.l.b16 %v987
        %v1044 = vunpack.c.l.b16 %v988
        %v1045 = vunpack.c.l.b16 %v989
        %v1046 = vunpack.c.l.b16 %v990
        %v1047 = vunpack.c.l.b16 %v991
        %v1048 = vunpack.c.l.b16 %v992
        %v1049 = vunpack.c.l.b16 %v993
        %v1050 = vunpack.c.l.b16 %v994
        %v1051 = vunpack.c.l.b16 %v995
        %v1052 = vunpack.c.l.b16 %v996
        %v1053 = vunpack.c.l.b16 %v997
        %v1054 = vunpack.c.l.b16 %v998
        %v1055 = vunpack.c.l.b16 %v999
        %v1056 = vunpack.c.l.b16 %v1000
        %v1057 = vunpack.c.l.b16 %v1001
        %v1058 = vpack.c.b16 %v1043, %v1042
        %v1059 = vpack.c.b16 %v1045, %v1044
        %v1060 = vpack.c.b16 %v1047, %v1046
        %v1061 = vpack.c.b16 %v1049, %v1048
        %v1062 = vpack.c.b16 %v1051, %v1050
        %v1063 = vpack.c.b16 %v1053, %v1052
        %v1064 = vpack.c.b16 %v1055, %v1054
        %v1065 = vpack.c.b16 %v1057, %v1056
        %1074 = vmatprep.subr.bf16.mxu0 0
        %1075 = vmatpush1.bf16.msra.mxu0 %v1065
        %1076 = vmatprep.subr.bf16.mxu0 0
        %1077 = vmatpush1.bf16.msra.mxu0 %v1064
        %1078 = vmatprep.subr.bf16.mxu0 0
        %1079 = vmatpush1.bf16.msra.mxu0 %v1063
        %1080 = vmatprep.subr.bf16.mxu0 0
        %1081 = vmatpush1.bf16.msra.mxu0 %v1062
        %1082 = vmatprep.subr.bf16.mxu0 0
        %1083 = vmatpush1.bf16.msra.mxu0 %v1061
        %1084 = vmatprep.subr.bf16.mxu0 0
        %1085 = vmatpush1.bf16.msra.mxu0 %v1060
        %1086 = vmatprep.subr.bf16.mxu0 0
        %1087 = vmatpush1.bf16.msra.mxu0 %v1059
        %1088 = vmatprep.subr.bf16.mxu0 0
        %1089 = vmatpush1.bf16.msra.mxu0 %v1058
        %1090 = vmatprep.subr.bf16.mxu0 0
        %1091 = vmatpush2.bf16.msra.mxu0 0
        %1092 = vmatprep.subr.bf16.mxu0 0
        %1093 = vmatpush2.bf16.msra.mxu0 0
        %1094 = vmatprep.subr.bf16.mxu0 0
        %1095 = vmatpush2.bf16.msra.mxu0 0
        %1096 = vmatprep.subr.bf16.mxu0 0
        %1097 = vmatpush2.bf16.msra.mxu0 0
        %1098 = vmatprep.subr.bf16.mxu0 0
        %1099 = vmatpush2.bf16.msra.mxu0 0
        %1100 = vmatprep.subr.bf16.mxu0 0
        %1101 = vmatpush2.bf16.msra.mxu0 0
        %1102 = vmatprep.subr.bf16.mxu0 0
        %1103 = vmatpush2.bf16.msra.mxu0 0
        %1104 = vmatprep.subr.bf16.mxu0 0
        %1105 = vmatpush2.bf16.msra.mxu0 0
        %1106 = vmatprep.mubr.bf16.mxu0 0
        %1107 = vmatmul.mubr.bf16.gmra.mxu0 %v1018
        %v1108 = vpop.f32.mrf.mxu0
        %v1109 = vadd.f32 0.0, %v1108
        %v1110 = vpop.f32.mrf.mxu0
        %v1111 = vpop.f32.mrf.mxu0
        %v1112 = vadd.f32 0.0, %v1111
        %v1113 = vpop.f32.mrf.mxu0
        %1114 = vmatprep.mubr.bf16.mxu0 0
        %1115 = vmatmul.mubr.bf16.gmra.mxu0 %v1019
        %v1116 = vpop.f32.mrf.mxu0
        %v1117 = vadd.f32 0.0, %v1116
        %v1118 = vpop.f32.mrf.mxu0
        %v1119 = vpop.f32.mrf.mxu0
        %v1120 = vadd.f32 0.0, %v1119
        %v1121 = vpop.f32.mrf.mxu0
        %1122 = vmatprep.mubr.bf16.mxu0 0
        %1123 = vmatmul.mubr.bf16.gmra.mxu0 %v1020
        %v1124 = vpop.f32.mrf.mxu0
        %v1125 = vadd.f32 0.0, %v1124
        %v1126 = vpop.f32.mrf.mxu0
        %v1127 = vpop.f32.mrf.mxu0
        %v1128 = vadd.f32 0.0, %v1127
        %v1129 = vpop.f32.mrf.mxu0
        %1130 = vmatprep.mubr.bf16.mxu0 0
        %1131 = vmatmul.mubr.bf16.gmra.mxu0 %v1021
        %v1132 = vpop.f32.mrf.mxu0
        %v1133 = vadd.f32 0.0, %v1132
        %v1134 = vpop.f32.mrf.mxu0
        %v1135 = vpop.f32.mrf.mxu0
        %v1136 = vadd.f32 0.0, %v1135
        %v1137 = vpop.f32.mrf.mxu0
        %1138 = vdwg.mxu0
        %v1139 = vadd.f32 %v969, %v1109
        %v1140 = vadd.f32 %v970, %v1112
        %v1141 = vadd.f32 %v971, %v1117
        %v1142 = vadd.f32 %v972, %v1120
        %v1143 = vadd.f32 %v973, %v1125
        %v1144 = vadd.f32 %v974, %v1128
        %v1145 = vadd.f32 %v975, %v1133
        %v1146 = vadd.f32 %v976, %v1136
        %v1147 = vld [vmem:[%s806] sm:$0xf]
        %v1148 = vld [vmem:[%s806 + $0x8] sm:$0x1]
        %v1149 = vld [vmem:[%s806 + $0x20] sm:$0xf]
        %v1150 = vld [vmem:[%s806 + $0x28] sm:$0x1]
        %v1151 = vld [vmem:[%s806 + $0x40] sm:$0xf]
        %v1152 = vld [vmem:[%s806 + $0x48] sm:$0x1]
        %v1153 = vld [vmem:[%s806 + $0x60] sm:$0xf]
        %v1154 = vld [vmem:[%s806 + $0x68] sm:$0x1]
        %v1155 = vld [vmem:[%s806 + $0x80] sm:$0xf]
        %v1156 = vld [vmem:[%s806 + $0x88] sm:$0x1]
        %v1157 = vld [vmem:[%s806 + $0xa0] sm:$0xf]
        %v1158 = vld [vmem:[%s806 + $0xa8] sm:$0x1]
        %v1159 = vld [vmem:[%s806 + $0xc0] sm:$0xf]
        %v1160 = vld [vmem:[%s806 + $0xc8] sm:$0x1]
        %v1161 = vld [vmem:[%s806 + $0xe0] sm:$0xf]
        %v1162 = vld [vmem:[%s806 + $0xe8] sm:$0x1]
        %v1164 = vshrl.u32 %v1147, 16
        %v1166 = vrot.slane %v1164, 4
        %v1167 = vshll.u32 %v1147, 16
        %v1169 = vrot.slane %v1167, 5
        %v1170 = vor.u32 %v1166, %v1169
        %v1171 = vrot.slane %v1170, 4
        %v1173 = vshll.u32 %v1148, 16
        %v1175 = vrot.slane %v1173, 5
        %v1176 = vsel %vm539, %v1171, %v1175
        %v1178 = vshrl.u32 %v1149, 16
        %v1180 = vrot.slane %v1178, 4
        %v1181 = vshll.u32 %v1149, 16
        %v1183 = vrot.slane %v1181, 5
        %v1184 = vor.u32 %v1180, %v1183
        %v1185 = vrot.slane %v1184, 4
        %v1187 = vshll.u32 %v1150, 16
        %v1189 = vrot.slane %v1187, 5
        %v1190 = vsel %vm539, %v1185, %v1189
        %v1192 = vshrl.u32 %v1151, 16
        %v1194 = vrot.slane %v1192, 4
        %v1195 = vshll.u32 %v1151, 16
        %v1197 = vrot.slane %v1195, 5
        %v1198 = vor.u32 %v1194, %v1197
        %v1199 = vrot.slane %v1198, 4
        %v1201 = vshll.u32 %v1152, 16
        %v1203 = vrot.slane %v1201, 5
        %v1204 = vsel %vm539, %v1199, %v1203
        %v1206 = vshrl.u32 %v1153, 16
        %v1208 = vrot.slane %v1206, 4
        %v1209 = vshll.u32 %v1153, 16
        %v1211 = vrot.slane %v1209, 5
        %v1212 = vor.u32 %v1208, %v1211
        %v1213 = vrot.slane %v1212, 4
        %v1215 = vshll.u32 %v1154, 16
        %v1217 = vrot.slane %v1215, 5
        %v1218 = vsel %vm539, %v1213, %v1217
        %v1220 = vshrl.u32 %v1155, 16
        %v1222 = vrot.slane %v1220, 4
        %v1223 = vshll.u32 %v1155, 16
        %v1225 = vrot.slane %v1223, 5
        %v1226 = vor.u32 %v1222, %v1225
        %v1227 = vrot.slane %v1226, 4
        %v1229 = vshll.u32 %v1156, 16
        %v1231 = vrot.slane %v1229, 5
        %v1232 = vsel %vm539, %v1227, %v1231
        %v1234 = vshrl.u32 %v1157, 16
        %v1236 = vrot.slane %v1234, 4
        %v1237 = vshll.u32 %v1157, 16
        %v1239 = vrot.slane %v1237, 5
        %v1240 = vor.u32 %v1236, %v1239
        %v1241 = vrot.slane %v1240, 4
        %v1243 = vshll.u32 %v1158, 16
        %v1245 = vrot.slane %v1243, 5
        %v1246 = vsel %vm539, %v1241, %v1245
        %v1248 = vshrl.u32 %v1159, 16
        %v1250 = vrot.slane %v1248, 4
        %v1251 = vshll.u32 %v1159, 16
        %v1253 = vrot.slane %v1251, 5
        %v1254 = vor.u32 %v1250, %v1253
        %v1255 = vrot.slane %v1254, 4
        %v1257 = vshll.u32 %v1160, 16
        %v1259 = vrot.slane %v1257, 5
        %v1260 = vsel %vm539, %v1255, %v1259
        %v1262 = vshrl.u32 %v1161, 16
        %v1264 = vrot.slane %v1262, 4
        %v1265 = vshll.u32 %v1161, 16
        %v1267 = vrot.slane %v1265, 5
        %v1268 = vor.u32 %v1264, %v1267
        %v1269 = vrot.slane %v1268, 4
        %v1271 = vshll.u32 %v1162, 16
        %v1273 = vrot.slane %v1271, 5
        %v1274 = vsel %vm539, %v1269, %v1273
        %s1275 = scalar_lea.vmem %s1, 320
        %v1276 = vld [vmem:[%s1275] sm:$0xf]
        %v1277 = vld [vmem:[%s1275 + $0x4] sm:$0xf]
        %v1278 = vld [vmem:[%s1275 + $0x8] sm:$0xf]
        %v1279 = vld [vmem:[%s1275 + $0xc] sm:$0xf]
        %v1280 = vld [vmem:[%s1275 + $0x10] sm:$0xf]
        %v1281 = vld [vmem:[%s1275 + $0x14] sm:$0xf]
        %v1282 = vld [vmem:[%s1275 + $0x18] sm:$0xf]
        %v1283 = vld [vmem:[%s1275 + $0x1c] sm:$0xf]
        %v1284 = vld [vmem:[%s1275 + $0x20] sm:$0xf]
        %v1285 = vld [vmem:[%s1275 + $0x24] sm:$0xf]
        %v1286 = vld [vmem:[%s1275 + $0x28] sm:$0xf]
        %v1287 = vld [vmem:[%s1275 + $0x2c] sm:$0xf]
        %v1288 = vld [vmem:[%s1275 + $0x30] sm:$0xf]
        %v1289 = vld [vmem:[%s1275 + $0x34] sm:$0xf]
        %v1290 = vld [vmem:[%s1275 + $0x38] sm:$0xf]
        %v1291 = vld [vmem:[%s1275 + $0x3c] sm:$0xf]
        %v1292 = vunpack.c.l.b16 %v1176
        %v1293 = vunpack.c.l.b16 %v1190
        %v1294 = vunpack.c.l.b16 %v1204
        %v1295 = vunpack.c.l.b16 %v1218
        %v1296 = vunpack.c.l.b16 %v1232
        %v1297 = vunpack.c.l.b16 %v1246
        %v1298 = vunpack.c.l.b16 %v1260
        %v1299 = vunpack.c.l.b16 %v1274
        %v1300 = vpack.c.b16 %v1293, %v1292
        %v1301 = vpack.c.b16 %v1295, %v1294
        %v1302 = vpack.c.b16 %v1297, %v1296
        %v1303 = vpack.c.b16 %v1299, %v1298
        %v1324 = vunpack.c.l.b16 %v1276
        %v1325 = vunpack.c.l.b16 %v1277
        %v1326 = vunpack.c.l.b16 %v1278
        %v1327 = vunpack.c.l.b16 %v1279
        %v1328 = vunpack.c.l.b16 %v1280
        %v1329 = vunpack.c.l.b16 %v1281
        %v1330 = vunpack.c.l.b16 %v1282
        %v1331 = vunpack.c.l.b16 %v1283
        %v1332 = vunpack.c.l.b16 %v1284
        %v1333 = vunpack.c.l.b16 %v1285
        %v1334 = vunpack.c.l.b16 %v1286
        %v1335 = vunpack.c.l.b16 %v1287
        %v1336 = vunpack.c.l.b16 %v1288
        %v1337 = vunpack.c.l.b16 %v1289
        %v1338 = vunpack.c.l.b16 %v1290
        %v1339 = vunpack.c.l.b16 %v1291
        %v1340 = vpack.c.b16 %v1325, %v1324
        %v1341 = vpack.c.b16 %v1327, %v1326
        %v1342 = vpack.c.b16 %v1329, %v1328
        %v1343 = vpack.c.b16 %v1331, %v1330
        %v1344 = vpack.c.b16 %v1333, %v1332
        %v1345 = vpack.c.b16 %v1335, %v1334
        %v1346 = vpack.c.b16 %v1337, %v1336
        %v1347 = vpack.c.b16 %v1339, %v1338
        %1356 = vmatprep.subr.bf16.mxu0 0
        %1357 = vmatpush1.bf16.msra.mxu0 %v1347
        %1358 = vmatprep.subr.bf16.mxu0 0
        %1359 = vmatpush1.bf16.msra.mxu0 %v1346
        %1360 = vmatprep.subr.bf16.mxu0 0
        %1361 = vmatpush1.bf16.msra.mxu0 %v1345
        %1362 = vmatprep.subr.bf16.mxu0 0
        %1363 = vmatpush1.bf16.msra.mxu0 %v1344
        %1364 = vmatprep.subr.bf16.mxu0 0
        %1365 = vmatpush1.bf16.msra.mxu0 %v1343
        %1366 = vmatprep.subr.bf16.mxu0 0
        %1367 = vmatpush1.bf16.msra.mxu0 %v1342
        %1368 = vmatprep.subr.bf16.mxu0 0
        %1369 = vmatpush1.bf16.msra.mxu0 %v1341
        %1370 = vmatprep.subr.bf16.mxu0 0
        %1371 = vmatpush1.bf16.msra.mxu0 %v1340
        %1372 = vmatprep.subr.bf16.mxu0 0
        %1373 = vmatpush2.bf16.msra.mxu0 0
        %1374 = vmatprep.subr.bf16.mxu0 0
        %1375 = vmatpush2.bf16.msra.mxu0 0
        %1376 = vmatprep.subr.bf16.mxu0 0
        %1377 = vmatpush2.bf16.msra.mxu0 0
        %1378 = vmatprep.subr.bf16.mxu0 0
        %1379 = vmatpush2.bf16.msra.mxu0 0
        %1380 = vmatprep.subr.bf16.mxu0 0
        %1381 = vmatpush2.bf16.msra.mxu0 0
        %1382 = vmatprep.subr.bf16.mxu0 0
        %1383 = vmatpush2.bf16.msra.mxu0 0
        %1384 = vmatprep.subr.bf16.mxu0 0
        %1385 = vmatpush2.bf16.msra.mxu0 0
        %1386 = vmatprep.subr.bf16.mxu0 0
        %1387 = vmatpush2.bf16.msra.mxu0 0
        %1388 = vmatprep.mubr.bf16.mxu0 0
        %1389 = vmatmul.mubr.bf16.gmra.mxu0 %v1300
        %v1390 = vpop.f32.mrf.mxu0
        %v1391 = vadd.f32 0.0, %v1390
        %v1392 = vpop.f32.mrf.mxu0
        %v1393 = vpop.f32.mrf.mxu0
        %v1394 = vadd.f32 0.0, %v1393
        %v1395 = vpop.f32.mrf.mxu0
        %1396 = vmatprep.mubr.bf16.mxu0 0
        %1397 = vmatmul.mubr.bf16.gmra.mxu0 %v1301
        %v1398 = vpop.f32.mrf.mxu0
        %v1399 = vadd.f32 0.0, %v1398
        %v1400 = vpop.f32.mrf.mxu0
        %v1401 = vpop.f32.mrf.mxu0
        %v1402 = vadd.f32 0.0, %v1401
        %v1403 = vpop.f32.mrf.mxu0
        %1404 = vmatprep.mubr.bf16.mxu0 0
        %1405 = vmatmul.mubr.bf16.gmra.mxu0 %v1302
        %v1406 = vpop.f32.mrf.mxu0
        %v1407 = vadd.f32 0.0, %v1406
        %v1408 = vpop.f32.mrf.mxu0
        %v1409 = vpop.f32.mrf.mxu0
        %v1410 = vadd.f32 0.0, %v1409
        %v1411 = vpop.f32.mrf.mxu0
        %1412 = vmatprep.mubr.bf16.mxu0 0
        %1413 = vmatmul.mubr.bf16.gmra.mxu0 %v1303
        %v1414 = vpop.f32.mrf.mxu0
        %v1415 = vadd.f32 0.0, %v1414
        %v1416 = vpop.f32.mrf.mxu0
        %v1417 = vpop.f32.mrf.mxu0
        %v1418 = vadd.f32 0.0, %v1417
        %v1419 = vpop.f32.mrf.mxu0
        %1420 = vdwg.mxu0
        %v1421 = vadd.f32 %v1139, %v1391
        %v1422 = vadd.f32 %v1140, %v1394
        %v1423 = vadd.f32 %v1141, %v1399
        %v1424 = vadd.f32 %v1142, %v1402
        %v1425 = vadd.f32 %v1143, %v1407
        %v1426 = vadd.f32 %v1144, %v1410
        %v1427 = vadd.f32 %v1145, %v1415
        %v1428 = vadd.f32 %v1146, %v1418
        %s1429 = scalar_lea.vmem %s196, 32
        %v1430 = vld [vmem:[%s1429] sm:$0xf]
        %v1431 = vld [vmem:[%s1429 + $0x20] sm:$0xf]
        %v1432 = vld [vmem:[%s1429 + $0x40] sm:$0xf]
        %v1433 = vld [vmem:[%s1429 + $0x60] sm:$0xf]
        %v1434 = vld [vmem:[%s1429 + $0x80] sm:$0xf]
        %v1435 = vld [vmem:[%s1429 + $0xa0] sm:$0xf]
        %v1436 = vld [vmem:[%s1429 + $0xc0] sm:$0xf]
        %v1437 = vld [vmem:[%s1429 + $0xe0] sm:$0xf]
        %s1438 = scalar_lea.vmem %s1, 384
        %v1439 = vld [vmem:[%s1438] sm:$0xf]
        %v1440 = vld [vmem:[%s1438 + $0x4] sm:$0xf]
        %v1441 = vld [vmem:[%s1438 + $0x8] sm:$0xf]
        %v1442 = vld [vmem:[%s1438 + $0xc] sm:$0xf]
        %v1443 = vld [vmem:[%s1438 + $0x10] sm:$0xf]
        %v1444 = vld [vmem:[%s1438 + $0x14] sm:$0xf]
        %v1445 = vld [vmem:[%s1438 + $0x18] sm:$0xf]
        %v1446 = vld [vmem:[%s1438 + $0x1c] sm:$0xf]
        %v1447 = vld [vmem:[%s1438 + $0x20] sm:$0xf]
        %v1448 = vld [vmem:[%s1438 + $0x24] sm:$0xf]
        %v1449 = vld [vmem:[%s1438 + $0x28] sm:$0xf]
        %v1450 = vld [vmem:[%s1438 + $0x2c] sm:$0xf]
        %v1451 = vld [vmem:[%s1438 + $0x30] sm:$0xf]
        %v1452 = vld [vmem:[%s1438 + $0x34] sm:$0xf]
        %v1453 = vld [vmem:[%s1438 + $0x38] sm:$0xf]
        %v1454 = vld [vmem:[%s1438 + $0x3c] sm:$0xf]
        %v1463 = vunpack.c.l.b16 %v1430
        %v1464 = vunpack.c.l.b16 %v1431
        %v1465 = vunpack.c.l.b16 %v1432
        %v1466 = vunpack.c.l.b16 %v1433
        %v1467 = vunpack.c.l.b16 %v1434
        %v1468 = vunpack.c.l.b16 %v1435
        %v1469 = vunpack.c.l.b16 %v1436
        %v1470 = vunpack.c.l.b16 %v1437
        %v1471 = vpack.c.b16 %v1464, %v1463
        %v1472 = vpack.c.b16 %v1466, %v1465
        %v1473 = vpack.c.b16 %v1468, %v1467
        %v1474 = vpack.c.b16 %v1470, %v1469
        %v1495 = vunpack.c.l.b16 %v1439
        %v1496 = vunpack.c.l.b16 %v1440
        %v1497 = vunpack.c.l.b16 %v1441
        %v1498 = vunpack.c.l.b16 %v1442
        %v1499 = vunpack.c.l.b16 %v1443
        %v1500 = vunpack.c.l.b16 %v1444
        %v1501 = vunpack.c.l.b16 %v1445
        %v1502 = vunpack.c.l.b16 %v1446
        %v1503 = vunpack.c.l.b16 %v1447
        %v1504 = vunpack.c.l.b16 %v1448
        %v1505 = vunpack.c.l.b16 %v1449
        %v1506 = vunpack.c.l.b16 %v1450
        %v1507 = vunpack.c.l.b16 %v1451
        %v1508 = vunpack.c.l.b16 %v1452
        %v1509 = vunpack.c.l.b16 %v1453
        %v1510 = vunpack.c.l.b16 %v1454
        %v1511 = vpack.c.b16 %v1496, %v1495
        %v1512 = vpack.c.b16 %v1498, %v1497
        %v1513 = vpack.c.b16 %v1500, %v1499
        %v1514 = vpack.c.b16 %v1502, %v1501
        %v1515 = vpack.c.b16 %v1504, %v1503
        %v1516 = vpack.c.b16 %v1506, %v1505
        %v1517 = vpack.c.b16 %v1508, %v1507
        %v1518 = vpack.c.b16 %v1510, %v1509
        %1527 = vmatprep.subr.bf16.mxu0 0
        %1528 = vmatpush1.bf16.msra.mxu0 %v1518
        %1529 = vmatprep.subr.bf16.mxu0 0
        %1530 = vmatpush1.bf16.msra.mxu0 %v1517
        %1531 = vmatprep.subr.bf16.mxu0 0
        %1532 = vmatpush1.bf16.msra.mxu0 %v1516
        %1533 = vmatprep.subr.bf16.mxu0 0
        %1534 = vmatpush1.bf16.msra.mxu0 %v1515
        %1535 = vmatprep.subr.bf16.mxu0 0
        %1536 = vmatpush1.bf16.msra.mxu0 %v1514
        %1537 = vmatprep.subr.bf16.mxu0 0
        %1538 = vmatpush1.bf16.msra.mxu0 %v1513
        %1539 = vmatprep.subr.bf16.mxu0 0
        %1540 = vmatpush1.bf16.msra.mxu0 %v1512
        %1541 = vmatprep.subr.bf16.mxu0 0
        %1542 = vmatpush1.bf16.msra.mxu0 %v1511
        %1543 = vmatprep.subr.bf16.mxu0 0
        %1544 = vmatpush2.bf16.msra.mxu0 0
        %1545 = vmatprep.subr.bf16.mxu0 0
        %1546 = vmatpush2.bf16.msra.mxu0 0
        %1547 = vmatprep.subr.bf16.mxu0 0
        %1548 = vmatpush2.bf16.msra.mxu0 0
        %1549 = vmatprep.subr.bf16.mxu0 0
        %1550 = vmatpush2.bf16.msra.mxu0 0
        %1551 = vmatprep.subr.bf16.mxu0 0
        %1552 = vmatpush2.bf16.msra.mxu0 0
        %1553 = vmatprep.subr.bf16.mxu0 0
        %1554 = vmatpush2.bf16.msra.mxu0 0
        %1555 = vmatprep.subr.bf16.mxu0 0
        %1556 = vmatpush2.bf16.msra.mxu0 0
        %1557 = vmatprep.subr.bf16.mxu0 0
        %1558 = vmatpush2.bf16.msra.mxu0 0
        %1559 = vmatprep.mubr.bf16.mxu0 0
        %1560 = vmatmul.mubr.bf16.gmra.mxu0 %v1471
        %v1561 = vpop.f32.mrf.mxu0
        %v1562 = vadd.f32 0.0, %v1561
        %v1563 = vpop.f32.mrf.mxu0
        %v1564 = vpop.f32.mrf.mxu0
        %v1565 = vadd.f32 0.0, %v1564
        %v1566 = vpop.f32.mrf.mxu0
        %1567 = vmatprep.mubr.bf16.mxu0 0
        %1568 = vmatmul.mubr.bf16.gmra.mxu0 %v1472
        %v1569 = vpop.f32.mrf.mxu0
        %v1570 = vadd.f32 0.0, %v1569
        %v1571 = vpop.f32.mrf.mxu0
        %v1572 = vpop.f32.mrf.mxu0
        %v1573 = vadd.f32 0.0, %v1572
        %v1574 = vpop.f32.mrf.mxu0
        %1575 = vmatprep.mubr.bf16.mxu0 0
        %1576 = vmatmul.mubr.bf16.gmra.mxu0 %v1473
        %v1577 = vpop.f32.mrf.mxu0
        %v1578 = vadd.f32 0.0, %v1577
        %v1579 = vpop.f32.mrf.mxu0
        %v1580 = vpop.f32.mrf.mxu0
        %v1581 = vadd.f32 0.0, %v1580
        %v1582 = vpop.f32.mrf.mxu0
        %1583 = vmatprep.mubr.bf16.mxu0 0
        %1584 = vmatmul.mubr.bf16.gmra.mxu0 %v1474
        %v1585 = vpop.f32.mrf.mxu0
        %v1586 = vadd.f32 0.0, %v1585
        %v1587 = vpop.f32.mrf.mxu0
        %v1588 = vpop.f32.mrf.mxu0
        %v1589 = vadd.f32 0.0, %v1588
        %v1590 = vpop.f32.mrf.mxu0
        %1591 = vdwg.mxu0
        %v1592 = vadd.f32 %v1421, %v1562
        %v1593 = vadd.f32 %v1422, %v1565
        %v1594 = vadd.f32 %v1423, %v1570
        %v1595 = vadd.f32 %v1424, %v1573
        %v1596 = vadd.f32 %v1425, %v1578
        %v1597 = vadd.f32 %v1426, %v1581
        %v1598 = vadd.f32 %v1427, %v1586
        %v1599 = vadd.f32 %v1428, %v1589
        %v1600 = vld [vmem:[%s1429 + $0x4] sm:$0xf]
        %v1601 = vld [vmem:[%s1429 + $0x24] sm:$0xf]
        %v1602 = vld [vmem:[%s1429 + $0x44] sm:$0xf]
        %v1603 = vld [vmem:[%s1429 + $0x64] sm:$0xf]
        %v1604 = vld [vmem:[%s1429 + $0x84] sm:$0xf]
        %v1605 = vld [vmem:[%s1429 + $0xa4] sm:$0xf]
        %v1606 = vld [vmem:[%s1429 + $0xc4] sm:$0xf]
        %v1607 = vld [vmem:[%s1429 + $0xe4] sm:$0xf]
        %s1608 = scalar_lea.vmem %s1, 448
        %v1609 = vld [vmem:[%s1608] sm:$0xf]
        %v1610 = vld [vmem:[%s1608 + $0x4] sm:$0xf]
        %v1611 = vld [vmem:[%s1608 + $0x8] sm:$0xf]
        %v1612 = vld [vmem:[%s1608 + $0xc] sm:$0xf]
        %v1613 = vld [vmem:[%s1608 + $0x10] sm:$0xf]
        %v1614 = vld [vmem:[%s1608 + $0x14] sm:$0xf]
        %v1615 = vld [vmem:[%s1608 + $0x18] sm:$0xf]
        %v1616 = vld [vmem:[%s1608 + $0x1c] sm:$0xf]
        %v1617 = vld [vmem:[%s1608 + $0x20] sm:$0xf]
        %v1618 = vld [vmem:[%s1608 + $0x24] sm:$0xf]
        %v1619 = vld [vmem:[%s1608 + $0x28] sm:$0xf]
        %v1620 = vld [vmem:[%s1608 + $0x2c] sm:$0xf]
        %v1621 = vld [vmem:[%s1608 + $0x30] sm:$0xf]
        %v1622 = vld [vmem:[%s1608 + $0x34] sm:$0xf]
        %v1623 = vld [vmem:[%s1608 + $0x38] sm:$0xf]
        %v1624 = vld [vmem:[%s1608 + $0x3c] sm:$0xf]
        %v1633 = vunpack.c.l.b16 %v1600
        %v1634 = vunpack.c.l.b16 %v1601
        %v1635 = vunpack.c.l.b16 %v1602
        %v1636 = vunpack.c.l.b16 %v1603
        %v1637 = vunpack.c.l.b16 %v1604
        %v1638 = vunpack.c.l.b16 %v1605
        %v1639 = vunpack.c.l.b16 %v1606
        %v1640 = vunpack.c.l.b16 %v1607
        %v1641 = vpack.c.b16 %v1634, %v1633
        %v1642 = vpack.c.b16 %v1636, %v1635
        %v1643 = vpack.c.b16 %v1638, %v1637
        %v1644 = vpack.c.b16 %v1640, %v1639
        %v1665 = vunpack.c.l.b16 %v1609
        %v1666 = vunpack.c.l.b16 %v1610
        %v1667 = vunpack.c.l.b16 %v1611
        %v1668 = vunpack.c.l.b16 %v1612
        %v1669 = vunpack.c.l.b16 %v1613
        %v1670 = vunpack.c.l.b16 %v1614
        %v1671 = vunpack.c.l.b16 %v1615
        %v1672 = vunpack.c.l.b16 %v1616
        %v1673 = vunpack.c.l.b16 %v1617
        %v1674 = vunpack.c.l.b16 %v1618
        %v1675 = vunpack.c.l.b16 %v1619
        %v1676 = vunpack.c.l.b16 %v1620
        %v1677 = vunpack.c.l.b16 %v1621
        %v1678 = vunpack.c.l.b16 %v1622
        %v1679 = vunpack.c.l.b16 %v1623
        %v1680 = vunpack.c.l.b16 %v1624
        %v1681 = vpack.c.b16 %v1666, %v1665
        %v1682 = vpack.c.b16 %v1668, %v1667
        %v1683 = vpack.c.b16 %v1670, %v1669
        %v1684 = vpack.c.b16 %v1672, %v1671
        %v1685 = vpack.c.b16 %v1674, %v1673
        %v1686 = vpack.c.b16 %v1676, %v1675
        %v1687 = vpack.c.b16 %v1678, %v1677
        %v1688 = vpack.c.b16 %v1680, %v1679
        %1697 = vmatprep.subr.bf16.mxu0 0
        %1698 = vmatpush1.bf16.msra.mxu0 %v1688
        %1699 = vmatprep.subr.bf16.mxu0 0
        %1700 = vmatpush1.bf16.msra.mxu0 %v1687
        %1701 = vmatprep.subr.bf16.mxu0 0
        %1702 = vmatpush1.bf16.msra.mxu0 %v1686
        %1703 = vmatprep.subr.bf16.mxu0 0
        %1704 = vmatpush1.bf16.msra.mxu0 %v1685
        %1705 = vmatprep.subr.bf16.mxu0 0
        %1706 = vmatpush1.bf16.msra.mxu0 %v1684
        %1707 = vmatprep.subr.bf16.mxu0 0
        %1708 = vmatpush1.bf16.msra.mxu0 %v1683
        %1709 = vmatprep.subr.bf16.mxu0 0
        %1710 = vmatpush1.bf16.msra.mxu0 %v1682
        %1711 = vmatprep.subr.bf16.mxu0 0
        %1712 = vmatpush1.bf16.msra.mxu0 %v1681
        %1713 = vmatprep.subr.bf16.mxu0 0
        %1714 = vmatpush2.bf16.msra.mxu0 0
        %1715 = vmatprep.subr.bf16.mxu0 0
        %1716 = vmatpush2.bf16.msra.mxu0 0
        %1717 = vmatprep.subr.bf16.mxu0 0
        %1718 = vmatpush2.bf16.msra.mxu0 0
        %1719 = vmatprep.subr.bf16.mxu0 0
        %1720 = vmatpush2.bf16.msra.mxu0 0
        %1721 = vmatprep.subr.bf16.mxu0 0
        %1722 = vmatpush2.bf16.msra.mxu0 0
        %1723 = vmatprep.subr.bf16.mxu0 0
        %1724 = vmatpush2.bf16.msra.mxu0 0
        %1725 = vmatprep.subr.bf16.mxu0 0
        %1726 = vmatpush2.bf16.msra.mxu0 0
        %1727 = vmatprep.subr.bf16.mxu0 0
        %1728 = vmatpush2.bf16.msra.mxu0 0
        %1729 = vmatprep.mubr.bf16.mxu0 0
        %1730 = vmatmul.mubr.bf16.gmra.mxu0 %v1641
        %v1731 = vpop.f32.mrf.mxu0
        %v1732 = vadd.f32 0.0, %v1731
        %v1733 = vpop.f32.mrf.mxu0
        %v1734 = vpop.f32.mrf.mxu0
        %v1735 = vadd.f32 0.0, %v1734
        %v1736 = vpop.f32.mrf.mxu0
        %1737 = vmatprep.mubr.bf16.mxu0 0
        %1738 = vmatmul.mubr.bf16.gmra.mxu0 %v1642
        %v1739 = vpop.f32.mrf.mxu0
        %v1740 = vadd.f32 0.0, %v1739
        %v1741 = vpop.f32.mrf.mxu0
        %v1742 = vpop.f32.mrf.mxu0
        %v1743 = vadd.f32 0.0, %v1742
        %v1744 = vpop.f32.mrf.mxu0
        %1745 = vmatprep.mubr.bf16.mxu0 0
        %1746 = vmatmul.mubr.bf16.gmra.mxu0 %v1643
        %v1747 = vpop.f32.mrf.mxu0
        %v1748 = vadd.f32 0.0, %v1747
        %v1749 = vpop.f32.mrf.mxu0
        %v1750 = vpop.f32.mrf.mxu0
        %v1751 = vadd.f32 0.0, %v1750
        %v1752 = vpop.f32.mrf.mxu0
        %1753 = vmatprep.mubr.bf16.mxu0 0
        %1754 = vmatmul.mubr.bf16.gmra.mxu0 %v1644
        %v1755 = vpop.f32.mrf.mxu0
        %v1756 = vadd.f32 0.0, %v1755
        %v1757 = vpop.f32.mrf.mxu0
        %v1758 = vpop.f32.mrf.mxu0
        %v1759 = vadd.f32 0.0, %v1758
        %v1760 = vpop.f32.mrf.mxu0
        %1761 = vdwg.mxu0
        %v1762 = vadd.f32 %v1592, %v1732
        %v1763 = vadd.f32 %v1593, %v1735
        %v1764 = vadd.f32 %v1594, %v1740
        %v1765 = vadd.f32 %v1595, %v1743
        %v1766 = vadd.f32 %v1596, %v1748
        %v1767 = vadd.f32 %v1597, %v1751
        %v1768 = vadd.f32 %v1598, %v1756
        %v1769 = vadd.f32 %v1599, %v1759
        %v1770 = vld [vmem:[%s1429] sm:$0xf]
        %v1771 = vld [vmem:[%s1429 + $0x8] sm:$0x1]
        %v1772 = vld [vmem:[%s1429 + $0x20] sm:$0xf]
        %v1773 = vld [vmem:[%s1429 + $0x28] sm:$0x1]
        %v1774 = vld [vmem:[%s1429 + $0x40] sm:$0xf]
        %v1775 = vld [vmem:[%s1429 + $0x48] sm:$0x1]
        %v1776 = vld [vmem:[%s1429 + $0x60] sm:$0xf]
        %v1777 = vld [vmem:[%s1429 + $0x68] sm:$0x1]
        %v1778 = vld [vmem:[%s1429 + $0x80] sm:$0xf]
        %v1779 = vld [vmem:[%s1429 + $0x88] sm:$0x1]
        %v1780 = vld [vmem:[%s1429 + $0xa0] sm:$0xf]
        %v1781 = vld [vmem:[%s1429 + $0xa8] sm:$0x1]
        %v1782 = vld [vmem:[%s1429 + $0xc0] sm:$0xf]
        %v1783 = vld [vmem:[%s1429 + $0xc8] sm:$0x1]
        %v1784 = vld [vmem:[%s1429 + $0xe0] sm:$0xf]
        %v1785 = vld [vmem:[%s1429 + $0xe8] sm:$0x1]
        %v1787 = vshrl.u32 %v1770, 16
        %v1789 = vrot.slane %v1787, 4
        %v1790 = vshll.u32 %v1770, 16
        %v1792 = vrot.slane %v1790, 5
        %v1793 = vor.u32 %v1789, %v1792
        %v1794 = vrot.slane %v1793, 4
        %v1796 = vshll.u32 %v1771, 16
        %v1798 = vrot.slane %v1796, 5
        %v1799 = vsel %vm539, %v1794, %v1798
        %v1801 = vshrl.u32 %v1772, 16
        %v1803 = vrot.slane %v1801, 4
        %v1804 = vshll.u32 %v1772, 16
        %v1806 = vrot.slane %v1804, 5
        %v1807 = vor.u32 %v1803, %v1806
        %v1808 = vrot.slane %v1807, 4
        %v1810 = vshll.u32 %v1773, 16
        %v1812 = vrot.slane %v1810, 5
        %v1813 = vsel %vm539, %v1808, %v1812
        %v1815 = vshrl.u32 %v1774, 16
        %v1817 = vrot.slane %v1815, 4
        %v1818 = vshll.u32 %v1774, 16
        %v1820 = vrot.slane %v1818, 5
        %v1821 = vor.u32 %v1817, %v1820
        %v1822 = vrot.slane %v1821, 4
        %v1824 = vshll.u32 %v1775, 16
        %v1826 = vrot.slane %v1824, 5
        %v1827 = vsel %vm539, %v1822, %v1826
        %v1829 = vshrl.u32 %v1776, 16
        %v1831 = vrot.slane %v1829, 4
        %v1832 = vshll.u32 %v1776, 16
        %v1834 = vrot.slane %v1832, 5
        %v1835 = vor.u32 %v1831, %v1834
        %v1836 = vrot.slane %v1835, 4
        %v1838 = vshll.u32 %v1777, 16
        %v1840 = vrot.slane %v1838, 5
        %v1841 = vsel %vm539, %v1836, %v1840
        %v1843 = vshrl.u32 %v1778, 16
        %v1845 = vrot.slane %v1843, 4
        %v1846 = vshll.u32 %v1778, 16
        %v1848 = vrot.slane %v1846, 5
        %v1849 = vor.u32 %v1845, %v1848
        %v1850 = vrot.slane %v1849, 4
        %v1852 = vshll.u32 %v1779, 16
        %v1854 = vrot.slane %v1852, 5
        %v1855 = vsel %vm539, %v1850, %v1854
        %v1857 = vshrl.u32 %v1780, 16
        %v1859 = vrot.slane %v1857, 4
        %v1860 = vshll.u32 %v1780, 16
        %v1862 = vrot.slane %v1860, 5
        %v1863 = vor.u32 %v1859, %v1862
        %v1864 = vrot.slane %v1863, 4
        %v1866 = vshll.u32 %v1781, 16
        %v1868 = vrot.slane %v1866, 5
        %v1869 = vsel %vm539, %v1864, %v1868
        %v1871 = vshrl.u32 %v1782, 16
        %v1873 = vrot.slane %v1871, 4
        %v1874 = vshll.u32 %v1782, 16
        %v1876 = vrot.slane %v1874, 5
        %v1877 = vor.u32 %v1873, %v1876
        %v1878 = vrot.slane %v1877, 4
        %v1880 = vshll.u32 %v1783, 16
        %v1882 = vrot.slane %v1880, 5
        %v1883 = vsel %vm539, %v1878, %v1882
        %v1885 = vshrl.u32 %v1784, 16
        %v1887 = vrot.slane %v1885, 4
        %v1888 = vshll.u32 %v1784, 16
        %v1890 = vrot.slane %v1888, 5
        %v1891 = vor.u32 %v1887, %v1890
        %v1892 = vrot.slane %v1891, 4
        %v1894 = vshll.u32 %v1785, 16
        %v1896 = vrot.slane %v1894, 5
        %v1897 = vsel %vm539, %v1892, %v1896
        %s1898 = scalar_lea.vmem %s1, 512
        %v1899 = vld [vmem:[%s1898] sm:$0xf]
        %v1900 = vld [vmem:[%s1898 + $0x4] sm:$0xf]
        %v1901 = vld [vmem:[%s1898 + $0x8] sm:$0xf]
        %v1902 = vld [vmem:[%s1898 + $0xc] sm:$0xf]
        %v1903 = vld [vmem:[%s1898 + $0x10] sm:$0xf]
        %v1904 = vld [vmem:[%s1898 + $0x14] sm:$0xf]
        %v1905 = vld [vmem:[%s1898 + $0x18] sm:$0xf]
        %v1906 = vld [vmem:[%s1898 + $0x1c] sm:$0xf]
        %v1907 = vld [vmem:[%s1898 + $0x20] sm:$0xf]
        %v1908 = vld [vmem:[%s1898 + $0x24] sm:$0xf]
        %v1909 = vld [vmem:[%s1898 + $0x28] sm:$0xf]
        %v1910 = vld [vmem:[%s1898 + $0x2c] sm:$0xf]
        %v1911 = vld [vmem:[%s1898 + $0x30] sm:$0xf]
        %v1912 = vld [vmem:[%s1898 + $0x34] sm:$0xf]
        %v1913 = vld [vmem:[%s1898 + $0x38] sm:$0xf]
        %v1914 = vld [vmem:[%s1898 + $0x3c] sm:$0xf]
        %v1915 = vunpack.c.l.b16 %v1799
        %v1916 = vunpack.c.l.b16 %v1813
        %v1917 = vunpack.c.l.b16 %v1827
        %v1918 = vunpack.c.l.b16 %v1841
        %v1919 = vunpack.c.l.b16 %v1855
        %v1920 = vunpack.c.l.b16 %v1869
        %v1921 = vunpack.c.l.b16 %v1883
        %v1922 = vunpack.c.l.b16 %v1897
        %v1923 = vpack.c.b16 %v1916, %v1915
        %v1924 = vpack.c.b16 %v1918, %v1917
        %v1925 = vpack.c.b16 %v1920, %v1919
        %v1926 = vpack.c.b16 %v1922, %v1921
        %v1947 = vunpack.c.l.b16 %v1899
        %v1948 = vunpack.c.l.b16 %v1900
        %v1949 = vunpack.c.l.b16 %v1901
        %v1950 = vunpack.c.l.b16 %v1902
        %v1951 = vunpack.c.l.b16 %v1903
        %v1952 = vunpack.c.l.b16 %v1904
        %v1953 = vunpack.c.l.b16 %v1905
        %v1954 = vunpack.c.l.b16 %v1906
        %v1955 = vunpack.c.l.b16 %v1907
        %v1956 = vunpack.c.l.b16 %v1908
        %v1957 = vunpack.c.l.b16 %v1909
        %v1958 = vunpack.c.l.b16 %v1910
        %v1959 = vunpack.c.l.b16 %v1911
        %v1960 = vunpack.c.l.b16 %v1912
        %v1961 = vunpack.c.l.b16 %v1913
        %v1962 = vunpack.c.l.b16 %v1914
        %v1963 = vpack.c.b16 %v1948, %v1947
        %v1964 = vpack.c.b16 %v1950, %v1949
        %v1965 = vpack.c.b16 %v1952, %v1951
        %v1966 = vpack.c.b16 %v1954, %v1953
        %v1967 = vpack.c.b16 %v1956, %v1955
        %v1968 = vpack.c.b16 %v1958, %v1957
        %v1969 = vpack.c.b16 %v1960, %v1959
        %v1970 = vpack.c.b16 %v1962, %v1961
        %1979 = vmatprep.subr.bf16.mxu0 0
        %1980 = vmatpush1.bf16.msra.mxu0 %v1970
        %1981 = vmatprep.subr.bf16.mxu0 0
        %1982 = vmatpush1.bf16.msra.mxu0 %v1969
        %1983 = vmatprep.subr.bf16.mxu0 0
        %1984 = vmatpush1.bf16.msra.mxu0 %v1968
        %1985 = vmatprep.subr.bf16.mxu0 0
        %1986 = vmatpush1.bf16.msra.mxu0 %v1967
        %1987 = vmatprep.subr.bf16.mxu0 0
        %1988 = vmatpush1.bf16.msra.mxu0 %v1966
        %1989 = vmatprep.subr.bf16.mxu0 0
        %1990 = vmatpush1.bf16.msra.mxu0 %v1965
        %1991 = vmatprep.subr.bf16.mxu0 0
        %1992 = vmatpush1.bf16.msra.mxu0 %v1964
        %1993 = vmatprep.subr.bf16.mxu0 0
        %1994 = vmatpush1.bf16.msra.mxu0 %v1963
        %1995 = vmatprep.subr.bf16.mxu0 0
        %1996 = vmatpush2.bf16.msra.mxu0 0
        %1997 = vmatprep.subr.bf16.mxu0 0
        %1998 = vmatpush2.bf16.msra.mxu0 0
        %1999 = vmatprep.subr.bf16.mxu0 0
        %2000 = vmatpush2.bf16.msra.mxu0 0
        %2001 = vmatprep.subr.bf16.mxu0 0
        %2002 = vmatpush2.bf16.msra.mxu0 0
        %2003 = vmatprep.subr.bf16.mxu0 0
        %2004 = vmatpush2.bf16.msra.mxu0 0
        %2005 = vmatprep.subr.bf16.mxu0 0
        %2006 = vmatpush2.bf16.msra.mxu0 0
        %2007 = vmatprep.subr.bf16.mxu0 0
        %2008 = vmatpush2.bf16.msra.mxu0 0
        %2009 = vmatprep.subr.bf16.mxu0 0
        %2010 = vmatpush2.bf16.msra.mxu0 0
        %2011 = vmatprep.mubr.bf16.mxu0 0
        %2012 = vmatmul.mubr.bf16.gmra.mxu0 %v1923
        %v2013 = vpop.f32.mrf.mxu0
        %v2014 = vadd.f32 0.0, %v2013
        %v2015 = vpop.f32.mrf.mxu0
        %v2016 = vpop.f32.mrf.mxu0
        %v2017 = vadd.f32 0.0, %v2016
        %v2018 = vpop.f32.mrf.mxu0
        %2019 = vmatprep.mubr.bf16.mxu0 0
        %2020 = vmatmul.mubr.bf16.gmra.mxu0 %v1924
        %v2021 = vpop.f32.mrf.mxu0
        %v2022 = vadd.f32 0.0, %v2021
        %v2023 = vpop.f32.mrf.mxu0
        %v2024 = vpop.f32.mrf.mxu0
        %v2025 = vadd.f32 0.0, %v2024
        %v2026 = vpop.f32.mrf.mxu0
        %2027 = vmatprep.mubr.bf16.mxu0 0
        %2028 = vmatmul.mubr.bf16.gmra.mxu0 %v1925
        %v2029 = vpop.f32.mrf.mxu0
        %v2030 = vadd.f32 0.0, %v2029
        %v2031 = vpop.f32.mrf.mxu0
        %v2032 = vpop.f32.mrf.mxu0
        %v2033 = vadd.f32 0.0, %v2032
        %v2034 = vpop.f32.mrf.mxu0
        %2035 = vmatprep.mubr.bf16.mxu0 0
        %2036 = vmatmul.mubr.bf16.gmra.mxu0 %v1926
        %v2037 = vpop.f32.mrf.mxu0
        %v2038 = vadd.f32 0.0, %v2037
        %v2039 = vpop.f32.mrf.mxu0
        %v2040 = vpop.f32.mrf.mxu0
        %v2041 = vadd.f32 0.0, %v2040
        %v2042 = vpop.f32.mrf.mxu0
        %2043 = vdwg.mxu0
        %v2044 = vadd.f32 %v1762, %v2014
        %v2045 = vadd.f32 %v1763, %v2017
        %v2046 = vadd.f32 %v1764, %v2022
        %v2047 = vadd.f32 %v1765, %v2025
        %v2048 = vadd.f32 %v1766, %v2030
        %v2049 = vadd.f32 %v1767, %v2033
        %v2050 = vadd.f32 %v1768, %v2038
        %v2051 = vadd.f32 %v1769, %v2041
        %v2052 = vld [vmem:[%s2] sm:$0x1]
        %v2054 = vlaneseq
        %v2055 = vshrl.u32 %v2054, 7
        %v2056 = vsub.s32 0, %v2055
        %v2057 = vrot.slane %v2052, %v2056
        %v2059 = vadd.f32 %v2044, %v2057
        %v2060 = vadd.f32 %v2045, %v2057
        %v2061 = vadd.f32 %v2046, %v2057
        %v2062 = vadd.f32 %v2047, %v2057
        %v2063 = vadd.f32 %v2048, %v2057
        %v2064 = vadd.f32 %v2049, %v2057
        %v2065 = vadd.f32 %v2050, %v2057
        %v2066 = vadd.f32 %v2051, %v2057
        %vm2067 = vcmp.gt.f32.partialorder %v2059, 0.0
        %vm2068 = vcmp.gt.f32.partialorder %v2060, 0.0
        %vm2069 = vcmp.gt.f32.partialorder %v2061, 0.0
        %vm2070 = vcmp.gt.f32.partialorder %v2062, 0.0
        %vm2071 = vcmp.gt.f32.partialorder %v2063, 0.0
        %vm2072 = vcmp.gt.f32.partialorder %v2064, 0.0
        %vm2073 = vcmp.gt.f32.partialorder %v2065, 0.0
        %vm2074 = vcmp.gt.f32.partialorder %v2066, 0.0
        %v2075 = vmul.f32 %v2059, 0.01
        %v2076 = vmul.f32 %v2060, 0.01
        %v2077 = vmul.f32 %v2061, 0.01
        %v2078 = vmul.f32 %v2062, 0.01
        %v2079 = vmul.f32 %v2063, 0.01
        %v2080 = vmul.f32 %v2064, 0.01
        %v2081 = vmul.f32 %v2065, 0.01
        %v2082 = vmul.f32 %v2066, 0.01
        %v2083 = vsel %vm2067, %v2059, %v2075
        %v2084 = vsel %vm2068, %v2060, %v2076
        %v2085 = vsel %vm2069, %v2061, %v2077
        %v2086 = vsel %vm2070, %v2062, %v2078
        %v2087 = vsel %vm2071, %v2063, %v2079
        %v2088 = vsel %vm2072, %v2064, %v2080
        %v2089 = vsel %vm2073, %v2065, %v2081
        %v2090 = vsel %vm2074, %v2066, %v2082
        %v2091 = vpack.c.bf16 %v2084, %v2083
        %v2092 = vpack.c.bf16 %v2086, %v2085
        %v2093 = vpack.c.bf16 %v2088, %v2087
        %v2094 = vpack.c.bf16 %v2090, %v2089
        %v2099 = vunpack.c.l.b16 %v2091
        %v2100 = vunpack.c.h.b16 %v2091
        %v2101 = vunpack.c.l.b16 %v2092
        %v2102 = vunpack.c.h.b16 %v2092
        %v2103 = vunpack.c.l.b16 %v2093
        %v2104 = vunpack.c.h.b16 %v2093
        %v2105 = vunpack.c.l.b16 %v2094
        %v2106 = vunpack.c.h.b16 %v2094
        %v2107 = vpack.c.b16 %v2099, %v2099
        %v2108 = vpack.c.b16 %v2100, %v2100
        %v2109 = vpack.c.b16 %v2101, %v2101
        %v2110 = vpack.c.b16 %v2102, %v2102
        %v2111 = vpack.c.b16 %v2103, %v2103
        %v2112 = vpack.c.b16 %v2104, %v2104
        %v2113 = vpack.c.b16 %v2105, %v2105
        %v2114 = vpack.c.b16 %v2106, %v2106
        %2123 = vst [vmem:[%s187] sm:$0xf] %v2107
        %2124 = vst [vmem:[%s187 + $0x4] sm:$0xf] %v2108
        %2125 = vst [vmem:[%s187 + $0x8] sm:$0xf] %v2109
        %2126 = vst [vmem:[%s187 + $0xc] sm:$0xf] %v2110
        %2127 = vst [vmem:[%s187 + $0x10] sm:$0xf] %v2111
        %2128 = vst [vmem:[%s187 + $0x14] sm:$0xf] %v2112
        %2129 = vst [vmem:[%s187 + $0x18] sm:$0xf] %v2113
        %2130 = vst [vmem:[%s187 + $0x1c] sm:$0xf] %v2114
        %s2131 = sand.u32 %s109, 1
        %s2132 = scalar_lea.sflag [#allocation3], %s2131
        %s2133 = sand.u32 %s109, 1
        %s2134 = smul.addr %s2133, 32
        %s2135 = scalar_lea.vmem [#allocation2], %s2134
        // Predicated region
        $region33: #{tpu_custom_call.1} parent=31 // pred_check
          %p2136 = pneg %p119
        $region34: #{tpu_custom_call.1} parent=31 // pred_check_branch
          %2138 = sbr.rel (%p2136) target = $region36
        $region35: #{tpu_custom_call.1} parent=31 // pred_region
          %s2140 = ssub.s32 512, 512
          %2141 = vsyncadd %s2132, %s2140
          %s2142 = smul.addr %s22, 8
          %s2143 = smul.addr %s21, 8
          %s2144 = sadd.s32 %s2142, %s2143
          %s2145 = smul.addr %s2144, 64
          %s2146 = scalar_lea.hbm %s3, %s2145
          %s2147 = sshll.u32 %s2135, 4
          %s2148 = int_to_ptr.vmem [resolvable:$true] %s2147
          %2153 = dma.vmem_to_hbm [thread:$0]  %s2148, 512, %s2146, %s2132, 64, 64, 4
        $region36: #{tpu_custom_call.1} parent=31 // pred_fallthru
          _
      $region32: #{tpu_custom_call.1} parent=5 // pred_fallthru
        _
      %p2154 = scmp.le.s32.totalorder 2, %s12
      // Predicated region
      $region37: #{tpu_custom_call.1} parent=5 // pred_check
        %p2155 = pneg %p2154
      $region38: #{tpu_custom_call.1} parent=5 // pred_check_branch
        %2157 = sbr.rel (%p2155) target = $region40
      $region39: #{tpu_custom_call.1} parent=5 // pred_region
        %s2158 = ssub.s32 %s12, 2
        // Predicated region
        $region41: #{tpu_custom_call.1} parent=39 // pred_check
          %p2159 = pneg %p125
        $region42: #{tpu_custom_call.1} parent=39 // pred_check_branch
          %2161 = sbr.rel (%p2159) target = $region44
        $region43: #{tpu_custom_call.1} parent=39 // pred_region
          %s2162 = sand.u32 %s110, 1
          %s2163 = scalar_lea.sflag [#allocation3], %s2162
          %s2164 = sand.u32 %s110, 1
          %s2165 = smul.addr %s2164, 32
          %s2166 = scalar_lea.vmem [#allocation2], %s2165
          %2167 = dma.done %s2163, 512
        $region44: #{tpu_custom_call.1} parent=39 // pred_fallthru
          _
      $region40: #{tpu_custom_call.1} parent=5 // pred_fallthru
        _
    $region6: #{tpu_custom_call.1} parent=1 // loop_footer
      %s16 = sadd.s32 1, %s12
    $region7: #{tpu_custom_call.1} parent=1 // loop_footer_branch
      %11 = sbr.rel target = $region3
    $region8: #{tpu_custom_call.1} parent=1 // loop_exit
      _
    %2168 = vsyncpa [#allocation3], 1
    %s2169 = scalar_lea.sflag [#allocation3], 1
    %2170 = vsyncpa %s2169, 1

</llo_original>
